<compile_context>
chip_gen: v6e
topology: v6e:2x2x1
jax: 0.10.0
libtpu: 0.0.40
codegen_flags: <defaults>
</compile_context>

<pallas_src>
import functools

import jax
import jax.numpy as jnp
import numpy as np
from jax.experimental import pallas as pl
from jax.experimental.pallas import tpu as pltpu

LANE = 128


# ----------------------------------------------------------------------------
# helpers
# ----------------------------------------------------------------------------
def create_staircase_matrix(rows, cols, granularity):
    """Staircase mask (same semantics as the PyTorch helper)."""
    m = np.tril(np.ones((rows, cols), dtype=np.float32))
    d = min(rows, cols)
    for i in range(0, d, granularity):
        m[i:i + granularity, i:i + granularity] = 1.0
    return jnp.asarray(m)


def _layernorm(x, gamma, beta, eps=1e-5):
    mu = jnp.mean(x, axis=-1, keepdims=True)
    var = jnp.mean((x - mu) ** 2, axis=-1, keepdims=True)
    return (x - mu) * jax.lax.rsqrt(var + eps) * gamma + beta


def _tensorcores_per_chip():
    """2 TensorCores on v7x, 1 on v5e/v6e; conservative fallback = 1."""
    try:
        kind = jax.devices()[0].device_kind.lower()
    except Exception:
        return 1
    return 2 if "v7" in kind else 1


# ----------------------------------------------------------------------------
# fused Pallas kernel: all layers + final head, residual stream resident in VMEM
# ----------------------------------------------------------------------------
def attention_unit_kernel(x_ref, bias_ref,
                          ln1_g_ref, ln1_b_ref, ln2_g_ref, ln2_b_ref,
                          wqkv_ref, wproj_ref, bproj_ref,
                          wff1_ref, bff1_ref, wff2_ref, bff2_ref,
                          lnf_g_ref, lnf_b_ref, wh_ref, bh_ref,
                          out_ref, x_scr, sa_scr,
                          *, num_heads, head_size, b_blk, seq_len,
                          mxu_dtype, approx_softmax):
    layer = pl.program_id(1)
    n_layers = pl.num_programs(1)
    C = num_heads * head_size
    rows = b_blk * seq_len

    @pl.when(layer == 0)
    def _():
        # load the residual stream into VMEM scratch once per batch block
        x_scr[...] = x_ref[...].reshape(rows, C)

    def mm(a, b):  # MXU matmul, bf16 (or f32) operands, f32 accumulation
        return jnp.dot(a.astype(mxu_dtype), b.astype(mxu_dtype),
                       preferred_element_type=jnp.float32)

    def softmax_rows(s):
        m = jnp.max(s, axis=-1, keepdims=True)
        e = jnp.exp(s - m)
        denom = jnp.sum(e, axis=-1, keepdims=True)
        return e * pl.reciprocal(denom, approx=approx_softmax)

    x = x_scr[...]                    # (rows, C) residual stream, f32
    bias = bias_ref[...]              # (T, T) additive mask (0 / -1e30)

    # ---- multi-head self-attention (fused QKV projection; scale folded in wq) ----
    h_in = _layernorm(x, ln1_g_ref[0], ln1_b_ref[0])
    qkv = mm(h_in, wqkv_ref[0])                       # (rows, 3C): one wide matmul
    qkv3 = qkv.reshape(b_blk, seq_len, 3 * C)

    # Per-head contraction batched over the batch dim; outputs go straight into a
    # (rows, C) VMEM scratch (no jnp.concatenate, no explicit k transpose, bounded
    # per-head liveness).  Full (b*H)-batched einsum would need a (T,H) transpose
    # in-kernel, skipped intentionally (see header).
    for h in range(num_heads):
        hs, he = h * head_size, (h + 1) * head_size
        q = qkv3[:, :, 0 * C + hs:0 * C + he]
        k = qkv3[:, :, 1 * C + hs:1 * C + he]
        v = qkv3[:, :, 2 * C + hs:2 * C + he]
        # contraction over the last dims (no materialized transpose); scale already
        # folded into wq at init time.
        s = jnp.einsum('bqd,bkd->bqk', q.astype(mxu_dtype), k.astype(mxu_dtype),
                       preferred_element_type=jnp.float32) + bias
        p = softmax_rows(s)
        o = jnp.einsum('bqk,bkd->bqd', p.astype(mxu_dtype), v.astype(mxu_dtype),
                       preferred_element_type=jnp.float32)
        sa_scr[:, hs:he] = o.reshape(rows, head_size)

    x = x + (mm(sa_scr[...], wproj_ref[0]) + bproj_ref[0])

    # ---- feed-forward ----
    f_in = _layernorm(x, ln2_g_ref[0], ln2_b_ref[0])
    h1 = jnp.maximum(mm(f_in, wff1_ref[0]) + bff1_ref[0], 0.0)
    x = x + (mm(h1, wff2_ref[0]) + bff2_ref[0])

    x_scr[...] = x                    # residual stays resident in VMEM across layers

    # ---- ln_f + lm_head folded into the last layer iteration (lane-dense output) ----
    @pl.when(layer == n_layers - 1)
    def _():
        fin = _layernorm(x, lnf_g_ref[...], lnf_b_ref[...])
        logits = mm(fin, wh_ref[...]) + bh_ref[...]       # (rows, O_pad), O_pad % 128 == 0
        out_ref[...] = logits.reshape(b_blk, seq_len, logits.shape[-1])


# ----------------------------------------------------------------------------
# wrapper (pallas_call plumbing)
# ----------------------------------------------------------------------------
def attention_unit_forward(x, params, attn_bias, *, num_heads, head_size,
                           out_features=None, mxu_dtype=jnp.bfloat16,
                           approx_softmax=True):
    """Full AttentionUnit forward (targets=None -> returns logits)."""
    B, T, C = x.shape
    L = params["wqkv"].shape[0]
    O_pad = params["w_head"].shape[1]          # already padded to a multiple of 128

    # Batch split only where there is a second TensorCore to feed (v7x).  On
    # single-TC v5e/v6e the batch grid axis would be a serial loop that re-streams
    # every per-layer weight from HBM once per block, so nb=1 there.
    n_tc = _tensorcores_per_chip()
    nb = 2 if (n_tc >= 2 and B % 2 == 0 and B >= 2) else 1
    b_blk = B // nb

    kernel = functools.partial(attention_unit_kernel,
                               num_heads=num_heads, head_size=head_size,
                               b_blk=b_blk, seq_len=T, mxu_dtype=mxu_dtype,
                               approx_softmax=approx_softmax)

    def per_layer(shape):
        # Scaling knob (not needed at toy shapes): pipeline_mode=pl.Buffered(3) here
        # to deepen weight prefetch on v6e when the per-layer DMA is exposed.
        n = len(shape)
        return pl.BlockSpec((1,) + tuple(shape[1:]),
                            lambda b, l, _n=n: (l,) + (0,) * (_n - 1))

    def const(shape):
        # Grid-invariant inputs; could be single-buffered (pl.Buffered(1)) to halve
        # their resident VMEM once w_head is (C, vocab)-sized.
        n = len(shape)
        return pl.BlockSpec(tuple(shape), lambda b, l, _n=n: (0,) * _n)

    x_spec = pl.BlockSpec((b_blk, T, C), lambda b, l: (b, 0, 0))
    out_spec = pl.BlockSpec((b_blk, T, O_pad), lambda b, l: (b, 0, 0))

    in_specs = [
        x_spec,
        const(attn_bias.shape),
        per_layer(params["ln1_g"].shape), per_layer(params["ln1_b"].shape),
        per_layer(params["ln2_g"].shape), per_layer(params["ln2_b"].shape),
        per_layer(params["wqkv"].shape), per_layer(params["wproj"].shape),
        per_layer(params["bproj"].shape),
        per_layer(params["wff1"].shape), per_layer(params["bff1"].shape),
        per_layer(params["wff2"].shape), per_layer(params["bff2"].shape),
        const(params["lnf_g"].shape), const(params["lnf_b"].shape),
        const(params["w_head"].shape), const(params["b_head"].shape),
    ]

    grid_spec = pltpu.PrefetchScalarGridSpec(
        num_scalar_prefetch=0,
        grid=(nb, L),
        in_specs=in_specs,
        out_specs=out_spec,
        scratch_shapes=[
            pltpu.VMEM((b_blk * T, C), jnp.float32),   # residual stream
            pltpu.VMEM((b_blk * T, C), jnp.float32),   # attention head outputs
        ],
    )

    out = pl.pallas_call(
        kernel,
        out_shape=jax.ShapeDtypeStruct((B, T, O_pad), jnp.float32),
        grid_spec=grid_spec,
        compiler_params=pltpu.CompilerParams(
            # On v7x, switching the batch axis to pltpu.CORE_PARALLEL guarantees both
            # TensorCores get a batch block.
            dimension_semantics=("parallel", "arbitrary"),
            # >= v5e's 16 MiB scoped default; well under v7x's 64 MiB physical VMEM.
            vmem_limit_bytes=32 * 1024 * 1024,
        ),
    )(x, attn_bias,
      params["ln1_g"], params["ln1_b"], params["ln2_g"], params["ln2_b"],
      params["wqkv"], params["wproj"], params["bproj"],
      params["wff1"], params["bff1"], params["wff2"], params["bff2"],
      params["lnf_g"], params["lnf_b"], params["w_head"], params["b_head"])

    if out_features is not None and out_features != O_pad:
        out = out[..., :out_features]      # drop the lane padding outside the kernel
    return out


# ----------------------------------------------------------------------------
# deterministic parameter init (matches the PyTorch module's shapes/init:
# Linear weights ~ N(0, 0.02), biases 0, LayerNorm gamma=1 / beta=0).
# Per-layer tensors are stacked with a leading n_layer axis; q/k/v weights are
# concatenated along the output dim as [q | k | v] for the fused projection.
# The attention scale 1/sqrt(head_size) is folded into wq, matmul weights are
# stored in bf16 (halves HBM->VMEM DMA), and the lm_head is zero-padded to a
# lane-dense (C, ceil(O/128)*128) shape.
# ----------------------------------------------------------------------------
def init_params(key, n_embd, n_head, n_layer, output_size, *, w_dtype=jnp.bfloat16):
    hidden = 4 * n_embd
    head_size = n_embd // n_head
    out_pad = ((output_size + LANE - 1) // LANE) * LANE

    def nrm(k, shape):
        return 0.02 * jax.random.normal(k, shape, dtype=jnp.float32)

    key, *ks = jax.random.split(key, 8)
    wq = nrm(ks[0], (n_layer, n_embd, n_embd)) * (head_size ** -0.5)  # folded scale
    wk = nrm(ks[1], (n_layer, n_embd, n_embd))
    wv = nrm(ks[2], (n_layer, n_embd, n_embd))
    wqkv = jnp.concatenate([wq, wk, wv], axis=-1).astype(w_dtype)      # (L, C, 3C)

    w_head = jnp.zeros((n_embd, out_pad), jnp.float32)
    w_head = w_head.at[:, :output_size].set(nrm(ks[6], (n_embd, output_size)))

    return dict(
        ln1_g=jnp.ones((n_layer, 1, n_embd), jnp.float32),
        ln1_b=jnp.zeros((n_layer, 1, n_embd), jnp.float32),
        ln2_g=jnp.ones((n_layer, 1, n_embd), jnp.float32),
        ln2_b=jnp.zeros((n_layer, 1, n_embd), jnp.float32),
        wqkv=wqkv,
        wproj=nrm(ks[3], (n_layer, n_embd, n_embd)).astype(w_dtype),
        bproj=jnp.zeros((n_layer, 1, n_embd), jnp.float32),
        wff1=nrm(ks[4], (n_layer, n_embd, hidden)).astype(w_dtype),
        bff1=jnp.zeros((n_layer, 1, hidden), jnp.float32),
        wff2=nrm(ks[5], (n_layer, hidden, n_embd)).astype(w_dtype),
        bff2=jnp.zeros((n_layer, 1, n_embd), jnp.float32),
        lnf_g=jnp.ones((1, n_embd), jnp.float32),
        lnf_b=jnp.zeros((1, n_embd), jnp.float32),
        w_head=w_head.astype(w_dtype),
        b_head=jnp.zeros((1, out_pad), jnp.float32),
    )


# ----------------------------------------------------------------------------
# pure-JAX reference (correctness sanity check, f32 math on the same bf16 weights)
# ----------------------------------------------------------------------------
def reference_forward(x, params, mask, *, num_heads, head_size):
    C = num_heads * head_size
    L = params["wqkv"].shape[0]
    f32 = jnp.float32
    for l in range(L):
        h = _layernorm(x, params["ln1_g"][l], params["ln1_b"][l])
        qkv = h @ params["wqkv"][l].astype(f32)     # scale already folded into wq
        outs = []
        for i in range(num_heads):
            q = qkv[..., 0 * C + i * head_size: 0 * C + (i + 1) * head_size]
            k = qkv[..., 1 * C + i * head_size: 1 * C + (i + 1) * head_size]
            v = qkv[..., 2 * C + i * head_size: 2 * C + (i + 1) * head_size]
            wei = q @ jnp.swapaxes(k, -1, -2)
            wei = jnp.where(mask == 0.0, -jnp.inf, wei)
            wei = jax.nn.softmax(wei, axis=-1)
            outs.append(wei @ v)
        sa = (jnp.concatenate(outs, axis=-1) @ params["wproj"][l].astype(f32)
              + params["bproj"][l])
        x = x + sa
        f = _layernorm(x, params["ln2_g"][l], params["ln2_b"][l])
        f = jnp.maximum(f @ params["wff1"][l].astype(f32) + params["bff1"][l], 0.0) \
            @ params["wff2"][l].astype(f32) + params["bff2"][l]
        x = x + f
    x = _layernorm(x, params["lnf_g"], params["lnf_b"])
    return x @ params["w_head"].astype(f32) + params["b_head"]


# ----------------------------------------------------------------------------
if __name__ == "__main__":
    # small config consistent with the module's constructor
    n_embd, n_head, block_size = 32, 4, 8
    n_layer, output_size = 2, 10
    granularity, matrix_type = 4, "staircase"
    head_size = n_embd // n_head
    B, T = 2, block_size

    key = jax.random.PRNGKey(0)
    k_x, k_p = jax.random.split(key)
    x = jax.random.normal(k_x, (B, T, n_embd), dtype=jnp.float32)
    params = init_params(k_p, n_embd, n_head, n_layer, output_size)

    if matrix_type == "full":
        mask = jnp.ones((block_size, block_size), jnp.float32)
    elif matrix_type == "triangular":
        mask = jnp.asarray(np.tril(np.ones((block_size, block_size), np.float32)))
    else:  # staircase
        mask = create_staircase_matrix(block_size, block_size, granularity)
    mask = mask[:T, :T]
    # additive attention bias: 0 where visible, -1e30 where masked
    attn_bias = jnp.where(mask == 0.0, jnp.float32(-1e30), jnp.float32(0.0))

    logits = attention_unit_forward(x, params, attn_bias,
                                    num_heads=n_head, head_size=head_size,
                                    out_features=output_size,
                                    mxu_dtype=jnp.bfloat16,      # full-rate MXU
                                    approx_softmax=True)          # False for tight validation
    logits = jax.block_until_ready(logits)

    ref = reference_forward(x, params, mask,
                            num_heads=n_head, head_size=head_size)[..., :output_size]
    # bf16 MXU operands + approx reciprocal vs f32 reference -> relaxed tolerance
    np.testing.assert_allclose(np.asarray(logits), np.asarray(ref),
                               rtol=1e-2, atol=1e-2)

    assert logits.shape == (B, T, output_size)
    print("KERNEL_OK")
</pallas_src>

<mosaic_0001>
module attributes {stable_mosaic.version = 11 : i64} {
  func.func @attention_unit_kernel(%arg0: i32, %arg1: i32, %arg2: memref<2x8x32xf32, #tpu.memory_space<vmem>>, %arg3: memref<8x8xf32, #tpu.memory_space<vmem>>, %arg4: memref<1x1x32xf32, #tpu.memory_space<vmem>>, %arg5: memref<1x1x32xf32, #tpu.memory_space<vmem>>, %arg6: memref<1x1x32xf32, #tpu.memory_space<vmem>>, %arg7: memref<1x1x32xf32, #tpu.memory_space<vmem>>, %arg8: memref<1x32x96xbf16, #tpu.memory_space<vmem>>, %arg9: memref<1x32x32xbf16, #tpu.memory_space<vmem>>, %arg10: memref<1x1x32xf32, #tpu.memory_space<vmem>>, %arg11: memref<1x32x128xbf16, #tpu.memory_space<vmem>>, %arg12: memref<1x1x128xf32, #tpu.memory_space<vmem>>, %arg13: memref<1x128x32xbf16, #tpu.memory_space<vmem>>, %arg14: memref<1x1x32xf32, #tpu.memory_space<vmem>>, %arg15: memref<1x32xf32, #tpu.memory_space<vmem>>, %arg16: memref<1x32xf32, #tpu.memory_space<vmem>>, %arg17: memref<32x128xbf16, #tpu.memory_space<vmem>>, %arg18: memref<1x128xf32, #tpu.memory_space<vmem>>, %arg19: memref<2x8x128xf32, #tpu.memory_space<vmem>>, %arg20: memref<16x32xf32, #tpu.memory_space<vmem>>, %arg21: memref<16x32xf32, #tpu.memory_space<vmem>>) attributes {dimension_semantics = [#tpu.dimension_semantics<parallel>, #tpu.dimension_semantics<arbitrary>], iteration_bounds = array<i64: 1, 2>, scalar_prefetch = 0 : i64, scratch_operands = 2 : i64, tpu.core_type = #tpu.core_type<tc>, window_params = [{transform_indices = @transform_0, window_bounds = array<i64: 2, 8, 32>}, {pipeline_mode = #tpu.pipeline_mode<synchronous>, transform_indices = @transform_1, window_bounds = array<i64: 8, 8>}, {transform_indices = @transform_2, window_bounds = array<i64: 1, 1, 32>}, {transform_indices = @transform_3, window_bounds = array<i64: 1, 1, 32>}, {transform_indices = @transform_4, window_bounds = array<i64: 1, 1, 32>}, {transform_indices = @transform_5, window_bounds = array<i64: 1, 1, 32>}, {transform_indices = @transform_6, window_bounds = array<i64: 1, 32, 96>}, {transform_indices = @transform_7, window_bounds = array<i64: 1, 32, 32>}, {transform_indices = @transform_8, window_bounds = array<i64: 1, 1, 32>}, {transform_indices = @transform_9, window_bounds = array<i64: 1, 32, 128>}, {transform_indices = @transform_10, window_bounds = array<i64: 1, 1, 128>}, {transform_indices = @transform_11, window_bounds = array<i64: 1, 128, 32>}, {transform_indices = @transform_12, window_bounds = array<i64: 1, 1, 32>}, {pipeline_mode = #tpu.pipeline_mode<synchronous>, transform_indices = @transform_13, window_bounds = array<i64: 1, 32>}, {pipeline_mode = #tpu.pipeline_mode<synchronous>, transform_indices = @transform_14, window_bounds = array<i64: 1, 32>}, {pipeline_mode = #tpu.pipeline_mode<synchronous>, transform_indices = @transform_15, window_bounds = array<i64: 32, 128>}, {pipeline_mode = #tpu.pipeline_mode<synchronous>, transform_indices = @transform_16, window_bounds = array<i64: 1, 128>}, {transform_indices = @transform_17, window_bounds = array<i64: 2, 8, 128>}]} {
    %c0_i32 = arith.constant 0 : i32
    %0 = arith.cmpi eq, %arg1, %c0_i32 : i32
    %1 = arith.extui %0 : i1 to i32
    %c0_i32_0 = arith.constant 0 : i32
    %2 = arith.cmpi ne, %1, %c0_i32_0 : i32
    scf.if %2 {
      %c0_77 = arith.constant 0 : index
      %c0_78 = arith.constant 0 : index
      %c0_79 = arith.constant 0 : index
      %191 = vector.load %arg2[%c0_77, %c0_78, %c0_79] : memref<2x8x32xf32, #tpu.memory_space<vmem>>, vector<2x8x32xf32>
      %192 = vector.shape_cast %191 : vector<2x8x32xf32> to vector<16x32xf32>
      %c0_80 = arith.constant 0 : index
      %c0_81 = arith.constant 0 : index
      %193 = vector.load %arg20[%c0_80, %c0_81] : memref<16x32xf32, #tpu.memory_space<vmem>>, vector<16x32xf32>
      tpu.vector_store %arg20[%c0_80, %c0_81], %192 {strides = array<i32>} : memref<16x32xf32, #tpu.memory_space<vmem>>, vector<16x32xf32>,
    } else {
    }
    %c0 = arith.constant 0 : index
    %c0_1 = arith.constant 0 : index
    %3 = vector.load %arg20[%c0, %c0_1] : memref<16x32xf32, #tpu.memory_space<vmem>>, vector<16x32xf32>
    %c0_2 = arith.constant 0 : index
    %c0_3 = arith.constant 0 : index
    %4 = vector.load %arg3[%c0_2, %c0_3] : memref<8x8xf32, #tpu.memory_space<vmem>>, vector<8x8xf32>
    %c0_4 = arith.constant 0 : index
    %c0_5 = arith.constant 0 : index
    %c0_6 = arith.constant 0 : index
    %5 = vector.load %arg4[%c0_4, %c0_5, %c0_6] : memref<1x1x32xf32, #tpu.memory_space<vmem>>, vector<1x1x32xf32>
    %6 = vector.shape_cast %5 : vector<1x1x32xf32> to vector<1x32xf32>
    %c0_7 = arith.constant 0 : index
    %c0_8 = arith.constant 0 : index
    %c0_9 = arith.constant 0 : index
    %7 = vector.load %arg5[%c0_7, %c0_8, %c0_9] : memref<1x1x32xf32, #tpu.memory_space<vmem>>, vector<1x1x32xf32>
    %8 = vector.shape_cast %7 : vector<1x1x32xf32> to vector<1x32xf32>
    %cst = arith.constant dense<0.000000e+00> : vector<16xf32>
    %9 = vector.multi_reduction <add>, %3, %cst [1] : vector<16x32xf32> to vector<16xf32>
    %10 = vector.shape_cast %9 : vector<16xf32> to vector<16x1xf32>
    %cst_10 = arith.constant 3.200000e+01 : f32
    %11 = vector.broadcast %cst_10 : f32 to vector<16x1xf32>
    %12 = arith.divf %10, %11 : vector<16x1xf32>
    %13 = vector.broadcast %12 : vector<16x1xf32> to vector<16x32xf32>
    %14 = arith.subf %3, %13 : vector<16x32xf32>
    %15 = arith.mulf %14, %14 : vector<16x32xf32>
    %cst_11 = arith.constant dense<0.000000e+00> : vector<16xf32>
    %16 = vector.multi_reduction <add>, %15, %cst_11 [1] : vector<16x32xf32> to vector<16xf32>
    %17 = vector.shape_cast %16 : vector<16xf32> to vector<16x1xf32>
    %cst_12 = arith.constant 3.200000e+01 : f32
    %18 = vector.broadcast %cst_12 : f32 to vector<16x1xf32>
    %19 = arith.divf %17, %18 : vector<16x1xf32>
    %20 = vector.broadcast %12 : vector<16x1xf32> to vector<16x32xf32>
    %21 = arith.subf %3, %20 : vector<16x32xf32>
    %cst_13 = arith.constant 9.99999974E-6 : f32
    %22 = vector.broadcast %cst_13 : f32 to vector<16x1xf32>
    %23 = arith.addf %19, %22 : vector<16x1xf32>
    %24 = math.rsqrt %23 : vector<16x1xf32>
    %25 = vector.broadcast %24 : vector<16x1xf32> to vector<16x32xf32>
    %26 = arith.mulf %21, %25 : vector<16x32xf32>
    %27 = vector.broadcast %6 : vector<1x32xf32> to vector<16x32xf32>
    %28 = arith.mulf %26, %27 : vector<16x32xf32>
    %29 = vector.broadcast %8 : vector<1x32xf32> to vector<16x32xf32>
    %30 = arith.addf %28, %29 : vector<16x32xf32>
    %c0_14 = arith.constant 0 : index
    %c0_15 = arith.constant 0 : index
    %c0_16 = arith.constant 0 : index
    %31 = vector.load %arg8[%c0_14, %c0_15, %c0_16] : memref<1x32x96xbf16, #tpu.memory_space<vmem>>, vector<1x32x96xbf16>
    %32 = vector.shape_cast %31 : vector<1x32x96xbf16> to vector<32x96xbf16>
    %33 = arith.truncf %30 : vector<16x32xf32> to vector<16x32xbf16>
    %cst_17 = arith.constant dense<0.000000e+00> : vector<16x96xf32>
    %34 = tpu.matmul %33, %32, %cst_17 {dimension_numbers = #tpu.dot_dimension_numbers<[1], [0], [0], [1], [0, 0, 1, 1], [], []>} : vector<16x32xbf16>, vector<32x96xbf16>, vector<16x96xf32> -> vector<16x96xf32>
    %35 = vector.shape_cast %34 : vector<16x96xf32> to vector<2x8x96xf32>
    %36 = vector.extract_strided_slice %35 {offsets = [0, 0, 0], sizes = [2, 8, 8], strides = [1, 1, 1]} : vector<2x8x96xf32> to vector<2x8x8xf32>
    %37 = vector.extract_strided_slice %35 {offsets = [0, 0, 32], sizes = [2, 8, 8], strides = [1, 1, 1]} : vector<2x8x96xf32> to vector<2x8x8xf32>
    %38 = vector.extract_strided_slice %35 {offsets = [0, 0, 64], sizes = [2, 8, 8], strides = [1, 1, 1]} : vector<2x8x96xf32> to vector<2x8x8xf32>
    %39 = arith.truncf %36 : vector<2x8x8xf32> to vector<2x8x8xbf16>
    %40 = arith.truncf %37 : vector<2x8x8xf32> to vector<2x8x8xbf16>
    "tpu.trace_start"() <{level = 10 : i32, message = "bqd,bkd->bqk"}> : () -> ()
    %cst_18 = arith.constant dense<0.000000e+00> : vector<2x8x8xf32>
    %41 = tpu.matmul %39, %40, %cst_18 {dimension_numbers = #tpu.dot_dimension_numbers<[2], [2], [1], [1], [0, 0, 0, 1, 1, 1], [0], [0]>} : vector<2x8x8xbf16>, vector<2x8x8xbf16>, vector<2x8x8xf32> -> vector<2x8x8xf32>
    "tpu.trace_stop"() : () -> ()
    %42 = vector.shape_cast %4 : vector<8x8xf32> to vector<1x8x8xf32>
    %43 = vector.broadcast %42 : vector<1x8x8xf32> to vector<2x8x8xf32>
    %44 = arith.addf %41, %43 : vector<2x8x8xf32>
    %cst_19 = arith.constant dense<0xFF800000> : vector<2x8xf32>
    %45 = vector.multi_reduction <maximumf>, %44, %cst_19 [2] : vector<2x8x8xf32> to vector<2x8xf32>
    %46 = vector.shape_cast %45 : vector<2x8xf32> to vector<2x8x1xf32>
    %47 = vector.broadcast %46 : vector<2x8x1xf32> to vector<2x8x8xf32>
    %48 = arith.subf %44, %47 : vector<2x8x8xf32>
    %49 = math.exp %48 : vector<2x8x8xf32>
    %cst_20 = arith.constant dense<0.000000e+00> : vector<2x8xf32>
    %50 = vector.multi_reduction <add>, %49, %cst_20 [2] : vector<2x8x8xf32> to vector<2x8xf32>
    %51 = vector.shape_cast %50 : vector<2x8xf32> to vector<2x8x1xf32>
    %52 = tpu.reciprocal %51 {approx = true} : vector<2x8x1xf32> -> vector<2x8x1xf32>
    %53 = vector.broadcast %52 : vector<2x8x1xf32> to vector<2x8x8xf32>
    %54 = arith.mulf %49, %53 : vector<2x8x8xf32>
    %55 = arith.truncf %54 : vector<2x8x8xf32> to vector<2x8x8xbf16>
    %56 = arith.truncf %38 : vector<2x8x8xf32> to vector<2x8x8xbf16>
    "tpu.trace_start"() <{level = 10 : i32, message = "bqk,bkd->bqd"}> : () -> ()
    %cst_21 = arith.constant dense<0.000000e+00> : vector<2x8x8xf32>
    %57 = tpu.matmul %55, %56, %cst_21 {dimension_numbers = #tpu.dot_dimension_numbers<[2], [1], [1], [2], [0, 0, 0, 1, 1, 2], [0], [0]>} : vector<2x8x8xbf16>, vector<2x8x8xbf16>, vector<2x8x8xf32> -> vector<2x8x8xf32>
    "tpu.trace_stop"() : () -> ()
    %58 = vector.shape_cast %57 : vector<2x8x8xf32> to vector<16x8xf32>
    %c0_22 = arith.constant 0 : index
    %c0_23 = arith.constant 0 : index
    %59 = vector.load %arg21[%c0_22, %c0_23] : memref<16x32xf32, #tpu.memory_space<vmem>>, vector<16x8xf32>
    tpu.vector_store %arg21[%c0_22, %c0_23], %58 {strides = array<i32>} : memref<16x32xf32, #tpu.memory_space<vmem>>, vector<16x8xf32>,
    %60 = vector.extract_strided_slice %35 {offsets = [0, 0, 8], sizes = [2, 8, 8], strides = [1, 1, 1]} : vector<2x8x96xf32> to vector<2x8x8xf32>
    %61 = vector.extract_strided_slice %35 {offsets = [0, 0, 40], sizes = [2, 8, 8], strides = [1, 1, 1]} : vector<2x8x96xf32> to vector<2x8x8xf32>
    %62 = vector.extract_strided_slice %35 {offsets = [0, 0, 72], sizes = [2, 8, 8], strides = [1, 1, 1]} : vector<2x8x96xf32> to vector<2x8x8xf32>
    %63 = arith.truncf %60 : vector<2x8x8xf32> to vector<2x8x8xbf16>
    %64 = arith.truncf %61 : vector<2x8x8xf32> to vector<2x8x8xbf16>
    "tpu.trace_start"() <{level = 10 : i32, message = "bqd,bkd->bqk"}> : () -> ()
    %cst_24 = arith.constant dense<0.000000e+00> : vector<2x8x8xf32>
    %65 = tpu.matmul %63, %64, %cst_24 {dimension_numbers = #tpu.dot_dimension_numbers<[2], [2], [1], [1], [0, 0, 0, 1, 1, 1], [0], [0]>} : vector<2x8x8xbf16>, vector<2x8x8xbf16>, vector<2x8x8xf32> -> vector<2x8x8xf32>
    "tpu.trace_stop"() : () -> ()
    %66 = vector.shape_cast %4 : vector<8x8xf32> to vector<1x8x8xf32>
    %67 = vector.broadcast %66 : vector<1x8x8xf32> to vector<2x8x8xf32>
    %68 = arith.addf %65, %67 : vector<2x8x8xf32>
    %cst_25 = arith.constant dense<0xFF800000> : vector<2x8xf32>
    %69 = vector.multi_reduction <maximumf>, %68, %cst_25 [2] : vector<2x8x8xf32> to vector<2x8xf32>
    %70 = vector.shape_cast %69 : vector<2x8xf32> to vector<2x8x1xf32>
    %71 = vector.broadcast %70 : vector<2x8x1xf32> to vector<2x8x8xf32>
    %72 = arith.subf %68, %71 : vector<2x8x8xf32>
    %73 = math.exp %72 : vector<2x8x8xf32>
    %cst_26 = arith.constant dense<0.000000e+00> : vector<2x8xf32>
    %74 = vector.multi_reduction <add>, %73, %cst_26 [2] : vector<2x8x8xf32> to vector<2x8xf32>
    %75 = vector.shape_cast %74 : vector<2x8xf32> to vector<2x8x1xf32>
    %76 = tpu.reciprocal %75 {approx = true} : vector<2x8x1xf32> -> vector<2x8x1xf32>
    %77 = vector.broadcast %76 : vector<2x8x1xf32> to vector<2x8x8xf32>
    %78 = arith.mulf %73, %77 : vector<2x8x8xf32>
    %79 = arith.truncf %78 : vector<2x8x8xf32> to vector<2x8x8xbf16>
    %80 = arith.truncf %62 : vector<2x8x8xf32> to vector<2x8x8xbf16>
    "tpu.trace_start"() <{level = 10 : i32, message = "bqk,bkd->bqd"}> : () -> ()
    %cst_27 = arith.constant dense<0.000000e+00> : vector<2x8x8xf32>
    %81 = tpu.matmul %79, %80, %cst_27 {dimension_numbers = #tpu.dot_dimension_numbers<[2], [1], [1], [2], [0, 0, 0, 1, 1, 2], [0], [0]>} : vector<2x8x8xbf16>, vector<2x8x8xbf16>, vector<2x8x8xf32> -> vector<2x8x8xf32>
    "tpu.trace_stop"() : () -> ()
    %82 = vector.shape_cast %81 : vector<2x8x8xf32> to vector<16x8xf32>
    %c0_28 = arith.constant 0 : index
    %c8 = arith.constant 8 : index
    %83 = vector.load %arg21[%c0_28, %c8] : memref<16x32xf32, #tpu.memory_space<vmem>>, vector<16x8xf32>
    tpu.vector_store %arg21[%c0_28, %c8], %82 {strides = array<i32>} : memref<16x32xf32, #tpu.memory_space<vmem>>, vector<16x8xf32>,
    %84 = vector.extract_strided_slice %35 {offsets = [0, 0, 16], sizes = [2, 8, 8], strides = [1, 1, 1]} : vector<2x8x96xf32> to vector<2x8x8xf32>
    %85 = vector.extract_strided_slice %35 {offsets = [0, 0, 48], sizes = [2, 8, 8], strides = [1, 1, 1]} : vector<2x8x96xf32> to vector<2x8x8xf32>
    %86 = vector.extract_strided_slice %35 {offsets = [0, 0, 80], sizes = [2, 8, 8], strides = [1, 1, 1]} : vector<2x8x96xf32> to vector<2x8x8xf32>
    %87 = arith.truncf %84 : vector<2x8x8xf32> to vector<2x8x8xbf16>
    %88 = arith.truncf %85 : vector<2x8x8xf32> to vector<2x8x8xbf16>
    "tpu.trace_start"() <{level = 10 : i32, message = "bqd,bkd->bqk"}> : () -> ()
    %cst_29 = arith.constant dense<0.000000e+00> : vector<2x8x8xf32>
    %89 = tpu.matmul %87, %88, %cst_29 {dimension_numbers = #tpu.dot_dimension_numbers<[2], [2], [1], [1], [0, 0, 0, 1, 1, 1], [0], [0]>} : vector<2x8x8xbf16>, vector<2x8x8xbf16>, vector<2x8x8xf32> -> vector<2x8x8xf32>
    "tpu.trace_stop"() : () -> ()
    %90 = vector.shape_cast %4 : vector<8x8xf32> to vector<1x8x8xf32>
    %91 = vector.broadcast %90 : vector<1x8x8xf32> to vector<2x8x8xf32>
    %92 = arith.addf %89, %91 : vector<2x8x8xf32>
    %cst_30 = arith.constant dense<0xFF800000> : vector<2x8xf32>
    %93 = vector.multi_reduction <maximumf>, %92, %cst_30 [2] : vector<2x8x8xf32> to vector<2x8xf32>
    %94 = vector.shape_cast %93 : vector<2x8xf32> to vector<2x8x1xf32>
    %95 = vector.broadcast %94 : vector<2x8x1xf32> to vector<2x8x8xf32>
    %96 = arith.subf %92, %95 : vector<2x8x8xf32>
    %97 = math.exp %96 : vector<2x8x8xf32>
    %cst_31 = arith.constant dense<0.000000e+00> : vector<2x8xf32>
    %98 = vector.multi_reduction <add>, %97, %cst_31 [2] : vector<2x8x8xf32> to vector<2x8xf32>
    %99 = vector.shape_cast %98 : vector<2x8xf32> to vector<2x8x1xf32>
    %100 = tpu.reciprocal %99 {approx = true} : vector<2x8x1xf32> -> vector<2x8x1xf32>
    %101 = vector.broadcast %100 : vector<2x8x1xf32> to vector<2x8x8xf32>
    %102 = arith.mulf %97, %101 : vector<2x8x8xf32>
    %103 = arith.truncf %102 : vector<2x8x8xf32> to vector<2x8x8xbf16>
    %104 = arith.truncf %86 : vector<2x8x8xf32> to vector<2x8x8xbf16>
    "tpu.trace_start"() <{level = 10 : i32, message = "bqk,bkd->bqd"}> : () -> ()
    %cst_32 = arith.constant dense<0.000000e+00> : vector<2x8x8xf32>
    %105 = tpu.matmul %103, %104, %cst_32 {dimension_numbers = #tpu.dot_dimension_numbers<[2], [1], [1], [2], [0, 0, 0, 1, 1, 2], [0], [0]>} : vector<2x8x8xbf16>, vector<2x8x8xbf16>, vector<2x8x8xf32> -> vector<2x8x8xf32>
    "tpu.trace_stop"() : () -> ()
    %106 = vector.shape_cast %105 : vector<2x8x8xf32> to vector<16x8xf32>
    %c0_33 = arith.constant 0 : index
    %c16 = arith.constant 16 : index
    %107 = vector.load %arg21[%c0_33, %c16] : memref<16x32xf32, #tpu.memory_space<vmem>>, vector<16x8xf32>
    tpu.vector_store %arg21[%c0_33, %c16], %106 {strides = array<i32>} : memref<16x32xf32, #tpu.memory_space<vmem>>, vector<16x8xf32>,
    %108 = vector.extract_strided_slice %35 {offsets = [0, 0, 24], sizes = [2, 8, 8], strides = [1, 1, 1]} : vector<2x8x96xf32> to vector<2x8x8xf32>
    %109 = vector.extract_strided_slice %35 {offsets = [0, 0, 56], sizes = [2, 8, 8], strides = [1, 1, 1]} : vector<2x8x96xf32> to vector<2x8x8xf32>
    %110 = vector.extract_strided_slice %35 {offsets = [0, 0, 88], sizes = [2, 8, 8], strides = [1, 1, 1]} : vector<2x8x96xf32> to vector<2x8x8xf32>
    %111 = arith.truncf %108 : vector<2x8x8xf32> to vector<2x8x8xbf16>
    %112 = arith.truncf %109 : vector<2x8x8xf32> to vector<2x8x8xbf16>
    "tpu.trace_start"() <{level = 10 : i32, message = "bqd,bkd->bqk"}> : () -> ()
    %cst_34 = arith.constant dense<0.000000e+00> : vector<2x8x8xf32>
    %113 = tpu.matmul %111, %112, %cst_34 {dimension_numbers = #tpu.dot_dimension_numbers<[2], [2], [1], [1], [0, 0, 0, 1, 1, 1], [0], [0]>} : vector<2x8x8xbf16>, vector<2x8x8xbf16>, vector<2x8x8xf32> -> vector<2x8x8xf32>
    "tpu.trace_stop"() : () -> ()
    %114 = vector.shape_cast %4 : vector<8x8xf32> to vector<1x8x8xf32>
    %115 = vector.broadcast %114 : vector<1x8x8xf32> to vector<2x8x8xf32>
    %116 = arith.addf %113, %115 : vector<2x8x8xf32>
    %cst_35 = arith.constant dense<0xFF800000> : vector<2x8xf32>
    %117 = vector.multi_reduction <maximumf>, %116, %cst_35 [2] : vector<2x8x8xf32> to vector<2x8xf32>
    %118 = vector.shape_cast %117 : vector<2x8xf32> to vector<2x8x1xf32>
    %119 = vector.broadcast %118 : vector<2x8x1xf32> to vector<2x8x8xf32>
    %120 = arith.subf %116, %119 : vector<2x8x8xf32>
    %121 = math.exp %120 : vector<2x8x8xf32>
    %cst_36 = arith.constant dense<0.000000e+00> : vector<2x8xf32>
    %122 = vector.multi_reduction <add>, %121, %cst_36 [2] : vector<2x8x8xf32> to vector<2x8xf32>
    %123 = vector.shape_cast %122 : vector<2x8xf32> to vector<2x8x1xf32>
    %124 = tpu.reciprocal %123 {approx = true} : vector<2x8x1xf32> -> vector<2x8x1xf32>
    %125 = vector.broadcast %124 : vector<2x8x1xf32> to vector<2x8x8xf32>
    %126 = arith.mulf %121, %125 : vector<2x8x8xf32>
    %127 = arith.truncf %126 : vector<2x8x8xf32> to vector<2x8x8xbf16>
    %128 = arith.truncf %110 : vector<2x8x8xf32> to vector<2x8x8xbf16>
    "tpu.trace_start"() <{level = 10 : i32, message = "bqk,bkd->bqd"}> : () -> ()
    %cst_37 = arith.constant dense<0.000000e+00> : vector<2x8x8xf32>
    %129 = tpu.matmul %127, %128, %cst_37 {dimension_numbers = #tpu.dot_dimension_numbers<[2], [1], [1], [2], [0, 0, 0, 1, 1, 2], [0], [0]>} : vector<2x8x8xbf16>, vector<2x8x8xbf16>, vector<2x8x8xf32> -> vector<2x8x8xf32>
    "tpu.trace_stop"() : () -> ()
    %130 = vector.shape_cast %129 : vector<2x8x8xf32> to vector<16x8xf32>
    %c0_38 = arith.constant 0 : index
    %c24 = arith.constant 24 : index
    %131 = vector.load %arg21[%c0_38, %c24] : memref<16x32xf32, #tpu.memory_space<vmem>>, vector<16x8xf32>
    tpu.vector_store %arg21[%c0_38, %c24], %130 {strides = array<i32>} : memref<16x32xf32, #tpu.memory_space<vmem>>, vector<16x8xf32>,
    %c0_39 = arith.constant 0 : index
    %c0_40 = arith.constant 0 : index
    %132 = vector.load %arg21[%c0_39, %c0_40] : memref<16x32xf32, #tpu.memory_space<vmem>>, vector<16x32xf32>
    %c0_41 = arith.constant 0 : index
    %c0_42 = arith.constant 0 : index
    %c0_43 = arith.constant 0 : index
    %133 = vector.load %arg9[%c0_41, %c0_42, %c0_43] : memref<1x32x32xbf16, #tpu.memory_space<vmem>>, vector<1x32x32xbf16>
    %134 = vector.shape_cast %133 : vector<1x32x32xbf16> to vector<32x32xbf16>
    %135 = arith.truncf %132 : vector<16x32xf32> to vector<16x32xbf16>
    %cst_44 = arith.constant dense<0.000000e+00> : vector<16x32xf32>
    %136 = tpu.matmul %135, %134, %cst_44 {dimension_numbers = #tpu.dot_dimension_numbers<[1], [0], [0], [1], [0, 0, 1, 1], [], []>} : vector<16x32xbf16>, vector<32x32xbf16>, vector<16x32xf32> -> vector<16x32xf32>
    %c0_45 = arith.constant 0 : index
    %c0_46 = arith.constant 0 : index
    %c0_47 = arith.constant 0 : index
    %137 = vector.load %arg10[%c0_45, %c0_46, %c0_47] : memref<1x1x32xf32, #tpu.memory_space<vmem>>, vector<1x1x32xf32>
    %138 = vector.shape_cast %137 : vector<1x1x32xf32> to vector<1x32xf32>
    %139 = vector.broadcast %138 : vector<1x32xf32> to vector<16x32xf32>
    %140 = arith.addf %136, %139 : vector<16x32xf32>
    %141 = arith.addf %3, %140 : vector<16x32xf32>
    %c0_48 = arith.constant 0 : index
    %c0_49 = arith.constant 0 : index
    %c0_50 = arith.constant 0 : index
    %142 = vector.load %arg6[%c0_48, %c0_49, %c0_50] : memref<1x1x32xf32, #tpu.memory_space<vmem>>, vector<1x1x32xf32>
    %143 = vector.shape_cast %142 : vector<1x1x32xf32> to vector<1x32xf32>
    %c0_51 = arith.constant 0 : index
    %c0_52 = arith.constant 0 : index
    %c0_53 = arith.constant 0 : index
    %144 = vector.load %arg7[%c0_51, %c0_52, %c0_53] : memref<1x1x32xf32, #tpu.memory_space<vmem>>, vector<1x1x32xf32>
    %145 = vector.shape_cast %144 : vector<1x1x32xf32> to vector<1x32xf32>
    %cst_54 = arith.constant dense<0.000000e+00> : vector<16xf32>
    %146 = vector.multi_reduction <add>, %141, %cst_54 [1] : vector<16x32xf32> to vector<16xf32>
    %147 = vector.shape_cast %146 : vector<16xf32> to vector<16x1xf32>
    %cst_55 = arith.constant 3.200000e+01 : f32
    %148 = vector.broadcast %cst_55 : f32 to vector<16x1xf32>
    %149 = arith.divf %147, %148 : vector<16x1xf32>
    %150 = vector.broadcast %149 : vector<16x1xf32> to vector<16x32xf32>
    %151 = arith.subf %141, %150 : vector<16x32xf32>
    %152 = arith.mulf %151, %151 : vector<16x32xf32>
    %cst_56 = arith.constant dense<0.000000e+00> : vector<16xf32>
    %153 = vector.multi_reduction <add>, %152, %cst_56 [1] : vector<16x32xf32> to vector<16xf32>
    %154 = vector.shape_cast %153 : vector<16xf32> to vector<16x1xf32>
    %cst_57 = arith.constant 3.200000e+01 : f32
    %155 = vector.broadcast %cst_57 : f32 to vector<16x1xf32>
    %156 = arith.divf %154, %155 : vector<16x1xf32>
    %157 = vector.broadcast %149 : vector<16x1xf32> to vector<16x32xf32>
    %158 = arith.subf %141, %157 : vector<16x32xf32>
    %cst_58 = arith.constant 9.99999974E-6 : f32
    %159 = vector.broadcast %cst_58 : f32 to vector<16x1xf32>
    %160 = arith.addf %156, %159 : vector<16x1xf32>
    %161 = math.rsqrt %160 : vector<16x1xf32>
    %162 = vector.broadcast %161 : vector<16x1xf32> to vector<16x32xf32>
    %163 = arith.mulf %158, %162 : vector<16x32xf32>
    %164 = vector.broadcast %143 : vector<1x32xf32> to vector<16x32xf32>
    %165 = arith.mulf %163, %164 : vector<16x32xf32>
    %166 = vector.broadcast %145 : vector<1x32xf32> to vector<16x32xf32>
    %167 = arith.addf %165, %166 : vector<16x32xf32>
    %c0_59 = arith.constant 0 : index
    %c0_60 = arith.constant 0 : index
    %c0_61 = arith.constant 0 : index
    %168 = vector.load %arg11[%c0_59, %c0_60, %c0_61] : memref<1x32x128xbf16, #tpu.memory_space<vmem>>, vector<1x32x128xbf16>
    %169 = vector.shape_cast %168 : vector<1x32x128xbf16> to vector<32x128xbf16>
    %170 = arith.truncf %167 : vector<16x32xf32> to vector<16x32xbf16>
    %cst_62 = arith.constant dense<0.000000e+00> : vector<16x128xf32>
    %171 = tpu.matmul %170, %169, %cst_62 {dimension_numbers = #tpu.dot_dimension_numbers<[1], [0], [0], [1], [0, 0, 1, 1], [], []>} : vector<16x32xbf16>, vector<32x128xbf16>, vector<16x128xf32> -> vector<16x128xf32>
    %c0_63 = arith.constant 0 : index
    %c0_64 = arith.constant 0 : index
    %c0_65 = arith.constant 0 : index
    %172 = vector.load %arg12[%c0_63, %c0_64, %c0_65] : memref<1x1x128xf32, #tpu.memory_space<vmem>>, vector<1x1x128xf32>
    %173 = vector.shape_cast %172 : vector<1x1x128xf32> to vector<1x128xf32>
    %174 = vector.broadcast %173 : vector<1x128xf32> to vector<16x128xf32>
    %175 = arith.addf %171, %174 : vector<16x128xf32>
    %cst_66 = arith.constant 0.000000e+00 : f32
    %176 = vector.broadcast %cst_66 : f32 to vector<16x128xf32>
    %177 = arith.maximumf %175, %176 : vector<16x128xf32>
    %c0_67 = arith.constant 0 : index
    %c0_68 = arith.constant 0 : index
    %c0_69 = arith.constant 0 : index
    %178 = vector.load %arg13[%c0_67, %c0_68, %c0_69] : memref<1x128x32xbf16, #tpu.memory_space<vmem>>, vector<1x128x32xbf16>
    %179 = vector.shape_cast %178 : vector<1x128x32xbf16> to vector<128x32xbf16>
    %180 = arith.truncf %177 : vector<16x128xf32> to vector<16x128xbf16>
    %cst_70 = arith.constant dense<0.000000e+00> : vector<16x32xf32>
    %181 = tpu.matmul %180, %179, %cst_70 {dimension_numbers = #tpu.dot_dimension_numbers<[1], [0], [0], [1], [0, 0, 1, 1], [], []>} : vector<16x128xbf16>, vector<128x32xbf16>, vector<16x32xf32> -> vector<16x32xf32>
    %c0_71 = arith.constant 0 : index
    %c0_72 = arith.constant 0 : index
    %c0_73 = arith.constant 0 : index
    %182 = vector.load %arg14[%c0_71, %c0_72, %c0_73] : memref<1x1x32xf32, #tpu.memory_space<vmem>>, vector<1x1x32xf32>
    %183 = vector.shape_cast %182 : vector<1x1x32xf32> to vector<1x32xf32>
    %184 = vector.broadcast %183 : vector<1x32xf32> to vector<16x32xf32>
    %185 = arith.addf %181, %184 : vector<16x32xf32>
    %186 = arith.addf %141, %185 : vector<16x32xf32>
    %c0_74 = arith.constant 0 : index
    %c0_75 = arith.constant 0 : index
    %187 = vector.load %arg20[%c0_74, %c0_75] : memref<16x32xf32, #tpu.memory_space<vmem>>, vector<16x32xf32>
    tpu.vector_store %arg20[%c0_74, %c0_75], %186 {strides = array<i32>} : memref<16x32xf32, #tpu.memory_space<vmem>>, vector<16x32xf32>,
    %c1_i32 = arith.constant 1 : i32
    %188 = arith.cmpi eq, %arg1, %c1_i32 : i32
    %189 = arith.extui %188 : i1 to i32
    %c0_i32_76 = arith.constant 0 : i32
    %190 = arith.cmpi ne, %189, %c0_i32_76 : i32
    scf.if %190 {
      %c0_77 = arith.constant 0 : index
      %c0_78 = arith.constant 0 : index
      %191 = vector.load %arg15[%c0_77, %c0_78] : memref<1x32xf32, #tpu.memory_space<vmem>>, vector<1x32xf32>
      %c0_79 = arith.constant 0 : index
      %c0_80 = arith.constant 0 : index
      %192 = vector.load %arg16[%c0_79, %c0_80] : memref<1x32xf32, #tpu.memory_space<vmem>>, vector<1x32xf32>
      %cst_81 = arith.constant dense<0.000000e+00> : vector<16xf32>
      %193 = vector.multi_reduction <add>, %186, %cst_81 [1] : vector<16x32xf32> to vector<16xf32>
      %194 = vector.shape_cast %193 : vector<16xf32> to vector<16x1xf32>
      %cst_82 = arith.constant 3.200000e+01 : f32
      %195 = vector.broadcast %cst_82 : f32 to vector<16x1xf32>
      %196 = arith.divf %194, %195 : vector<16x1xf32>
      %197 = vector.broadcast %196 : vector<16x1xf32> to vector<16x32xf32>
      %198 = arith.subf %186, %197 : vector<16x32xf32>
      %199 = arith.mulf %198, %198 : vector<16x32xf32>
      %cst_83 = arith.constant dense<0.000000e+00> : vector<16xf32>
      %200 = vector.multi_reduction <add>, %199, %cst_83 [1] : vector<16x32xf32> to vector<16xf32>
      %201 = vector.shape_cast %200 : vector<16xf32> to vector<16x1xf32>
      %cst_84 = arith.constant 3.200000e+01 : f32
      %202 = vector.broadcast %cst_84 : f32 to vector<16x1xf32>
      %203 = arith.divf %201, %202 : vector<16x1xf32>
      %204 = vector.broadcast %196 : vector<16x1xf32> to vector<16x32xf32>
      %205 = arith.subf %186, %204 : vector<16x32xf32>
      %cst_85 = arith.constant 9.99999974E-6 : f32
      %206 = vector.broadcast %cst_85 : f32 to vector<16x1xf32>
      %207 = arith.addf %203, %206 : vector<16x1xf32>
      %208 = math.rsqrt %207 : vector<16x1xf32>
      %209 = vector.broadcast %208 : vector<16x1xf32> to vector<16x32xf32>
      %210 = arith.mulf %205, %209 : vector<16x32xf32>
      %211 = vector.broadcast %191 : vector<1x32xf32> to vector<16x32xf32>
      %212 = arith.mulf %210, %211 : vector<16x32xf32>
      %213 = vector.broadcast %192 : vector<1x32xf32> to vector<16x32xf32>
      %214 = arith.addf %212, %213 : vector<16x32xf32>
      %c0_86 = arith.constant 0 : index
      %c0_87 = arith.constant 0 : index
      %215 = vector.load %arg17[%c0_86, %c0_87] : memref<32x128xbf16, #tpu.memory_space<vmem>>, vector<32x128xbf16>
      %216 = arith.truncf %214 : vector<16x32xf32> to vector<16x32xbf16>
      %cst_88 = arith.constant dense<0.000000e+00> : vector<16x128xf32>
      %217 = tpu.matmul %216, %215, %cst_88 {dimension_numbers = #tpu.dot_dimension_numbers<[1], [0], [0], [1], [0, 0, 1, 1], [], []>} : vector<16x32xbf16>, vector<32x128xbf16>, vector<16x128xf32> -> vector<16x128xf32>
      %c0_89 = arith.constant 0 : index
      %c0_90 = arith.constant 0 : index
      %218 = vector.load %arg18[%c0_89, %c0_90] : memref<1x128xf32, #tpu.memory_space<vmem>>, vector<1x128xf32>
      %219 = vector.broadcast %218 : vector<1x128xf32> to vector<16x128xf32>
      %220 = arith.addf %217, %219 : vector<16x128xf32>
      %221 = vector.shape_cast %220 : vector<16x128xf32> to vector<2x8x128xf32>
      %c0_91 = arith.constant 0 : index
      %c0_92 = arith.constant 0 : index
      %c0_93 = arith.constant 0 : index
      %222 = vector.load %arg19[%c0_91, %c0_92, %c0_93] : memref<2x8x128xf32, #tpu.memory_space<vmem>>, vector<2x8x128xf32>
      tpu.vector_store %arg19[%c0_91, %c0_92, %c0_93], %221 {strides = array<i32>} : memref<2x8x128xf32, #tpu.memory_space<vmem>>, vector<2x8x128xf32>,
    } else {
    }
    return
  }
  func.func @transform_0(%arg0: i32, %arg1: i32) -> (i32, i32, i32) {
    %c0_i32 = arith.constant 0 : i32
    %c0_i32_0 = arith.constant 0 : i32
    %c0_i32_1 = arith.constant 0 : i32
    return %arg0, %c0_i32, %c0_i32_0 : i32, i32, i32
  }
  func.func @transform_1(%arg0: i32, %arg1: i32) -> (i32, i32) {
    %c0_i32 = arith.constant 0 : i32
    %c0_i32_0 = arith.constant 0 : i32
    %c0_i32_1 = arith.constant 0 : i32
    return %c0_i32, %c0_i32_0 : i32, i32
  }
  func.func @transform_2(%arg0: i32, %arg1: i32) -> (i32, i32, i32) {
    %c0_i32 = arith.constant 0 : i32
    %c0_i32_0 = arith.constant 0 : i32
    %c0_i32_1 = arith.constant 0 : i32
    return %arg1, %c0_i32, %c0_i32_0 : i32, i32, i32
  }
  func.func @transform_3(%arg0: i32, %arg1: i32) -> (i32, i32, i32) {
    %c0_i32 = arith.constant 0 : i32
    %c0_i32_0 = arith.constant 0 : i32
    %c0_i32_1 = arith.constant 0 : i32
    return %arg1, %c0_i32, %c0_i32_0 : i32, i32, i32
  }
  func.func @transform_4(%arg0: i32, %arg1: i32) -> (i32, i32, i32) {
    %c0_i32 = arith.constant 0 : i32
    %c0_i32_0 = arith.constant 0 : i32
    %c0_i32_1 = arith.constant 0 : i32
    return %arg1, %c0_i32, %c0_i32_0 : i32, i32, i32
  }
  func.func @transform_5(%arg0: i32, %arg1: i32) -> (i32, i32, i32) {
    %c0_i32 = arith.constant 0 : i32
    %c0_i32_0 = arith.constant 0 : i32
    %c0_i32_1 = arith.constant 0 : i32
    return %arg1, %c0_i32, %c0_i32_0 : i32, i32, i32
  }
  func.func @transform_6(%arg0: i32, %arg1: i32) -> (i32, i32, i32) {
    %c0_i32 = arith.constant 0 : i32
    %c0_i32_0 = arith.constant 0 : i32
    %c0_i32_1 = arith.constant 0 : i32
    return %arg1, %c0_i32, %c0_i32_0 : i32, i32, i32
  }
  func.func @transform_7(%arg0: i32, %arg1: i32) -> (i32, i32, i32) {
    %c0_i32 = arith.constant 0 : i32
    %c0_i32_0 = arith.constant 0 : i32
    %c0_i32_1 = arith.constant 0 : i32
    return %arg1, %c0_i32, %c0_i32_0 : i32, i32, i32
  }
  func.func @transform_8(%arg0: i32, %arg1: i32) -> (i32, i32, i32) {
    %c0_i32 = arith.constant 0 : i32
    %c0_i32_0 = arith.constant 0 : i32
    %c0_i32_1 = arith.constant 0 : i32
    return %arg1, %c0_i32, %c0_i32_0 : i32, i32, i32
  }
  func.func @transform_9(%arg0: i32, %arg1: i32) -> (i32, i32, i32) {
    %c0_i32 = arith.constant 0 : i32
    %c0_i32_0 = arith.constant 0 : i32
    %c0_i32_1 = arith.constant 0 : i32
    return %arg1, %c0_i32, %c0_i32_0 : i32, i32, i32
  }
  func.func @transform_10(%arg0: i32, %arg1: i32) -> (i32, i32, i32) {
    %c0_i32 = arith.constant 0 : i32
    %c0_i32_0 = arith.constant 0 : i32
    %c0_i32_1 = arith.constant 0 : i32
    return %arg1, %c0_i32, %c0_i32_0 : i32, i32, i32
  }
  func.func @transform_11(%arg0: i32, %arg1: i32) -> (i32, i32, i32) {
    %c0_i32 = arith.constant 0 : i32
    %c0_i32_0 = arith.constant 0 : i32
    %c0_i32_1 = arith.constant 0 : i32
    return %arg1, %c0_i32, %c0_i32_0 : i32, i32, i32
  }
  func.func @transform_12(%arg0: i32, %arg1: i32) -> (i32, i32, i32) {
    %c0_i32 = arith.constant 0 : i32
    %c0_i32_0 = arith.constant 0 : i32
    %c0_i32_1 = arith.constant 0 : i32
    return %arg1, %c0_i32, %c0_i32_0 : i32, i32, i32
  }
  func.func @transform_13(%arg0: i32, %arg1: i32) -> (i32, i32) {
    %c0_i32 = arith.constant 0 : i32
    %c0_i32_0 = arith.constant 0 : i32
    %c0_i32_1 = arith.constant 0 : i32
    return %c0_i32, %c0_i32_0 : i32, i32
  }
  func.func @transform_14(%arg0: i32, %arg1: i32) -> (i32, i32) {
    %c0_i32 = arith.constant 0 : i32
    %c0_i32_0 = arith.constant 0 : i32
    %c0_i32_1 = arith.constant 0 : i32
    return %c0_i32, %c0_i32_0 : i32, i32
  }
  func.func @transform_15(%arg0: i32, %arg1: i32) -> (i32, i32) {
    %c0_i32 = arith.constant 0 : i32
    %c0_i32_0 = arith.constant 0 : i32
    %c0_i32_1 = arith.constant 0 : i32
    return %c0_i32, %c0_i32_0 : i32, i32
  }
  func.func @transform_16(%arg0: i32, %arg1: i32) -> (i32, i32) {
    %c0_i32 = arith.constant 0 : i32
    %c0_i32_0 = arith.constant 0 : i32
    %c0_i32_1 = arith.constant 0 : i32
    return %c0_i32, %c0_i32_0 : i32, i32
  }
  func.func @transform_17(%arg0: i32, %arg1: i32) -> (i32, i32, i32) {
    %c0_i32 = arith.constant 0 : i32
    %c0_i32_0 = arith.constant 0 : i32
    %c0_i32_1 = arith.constant 0 : i32
    return %arg0, %c0_i32, %c0_i32_0 : i32, i32, i32
  }
}

</mosaic_0001>

<llo_original>
// kernel: tpu_custom_call.1
$region0: #{tpu_custom_call.1}
  #allocation0 [shape = 'u32[]', space=smem, size = 0x4, offset = 0x4, fixed_abs, tag = 'smem constant byte address 0x4 - core index']
  #allocation1 [shape = 'u32[144,128]{1,0:T(1,128)}', space=vmem, size = 0x12000, scoped, tag = 'internal scratch']
  #allocation2 [shape = 'f32[16,32]{1,0:T(8,128)}', space=vmem, size = 0x2000, scoped, tag = 'scratch operand']
  #allocation3 [shape = 'f32[16,32]{1,0:T(8,128)}', space=vmem, size = 0x2000, scoped, tag = 'scratch operand']
  %s0 = inlined_call_operand.vmem [shape: f32[2,8,32], index: 0, kind: input, shape index: {}]
  %s1 = inlined_call_operand.vmem [shape: f32[8,8], index: 1, kind: input, shape index: {}]
  %s2 = inlined_call_operand.vmem [shape: f32[2,1,32], index: 2, kind: input, shape index: {}]
  %s3 = inlined_call_operand.vmem [shape: f32[2,1,32], index: 3, kind: input, shape index: {}]
  %s4 = inlined_call_operand.vmem [shape: f32[2,1,32], index: 4, kind: input, shape index: {}]
  %s5 = inlined_call_operand.vmem [shape: f32[2,1,32], index: 5, kind: input, shape index: {}]
  %s6 = inlined_call_operand.vmem [shape: bf16[2,32,96], index: 6, kind: input, shape index: {}]
  %s7 = inlined_call_operand.vmem [shape: bf16[2,32,32], index: 7, kind: input, shape index: {}]
  %s8 = inlined_call_operand.vmem [shape: f32[2,1,32], index: 8, kind: input, shape index: {}]
  %s9 = inlined_call_operand.vmem [shape: bf16[2,32,128], index: 9, kind: input, shape index: {}]
  %s10 = inlined_call_operand.vmem [shape: f32[2,1,128], index: 10, kind: input, shape index: {}]
  %s11 = inlined_call_operand.vmem [shape: bf16[2,128,32], index: 11, kind: input, shape index: {}]
  %s12 = inlined_call_operand.vmem [shape: f32[2,1,32], index: 12, kind: input, shape index: {}]
  %s13 = inlined_call_operand.vmem [shape: f32[1,32], index: 13, kind: input, shape index: {}]
  %s14 = inlined_call_operand.vmem [shape: f32[1,32], index: 14, kind: input, shape index: {}]
  %s15 = inlined_call_operand.vmem [shape: bf16[32,128], index: 15, kind: input, shape index: {}]
  %s16 = inlined_call_operand.vmem [shape: f32[1,128], index: 16, kind: input, shape index: {}]
  %s17 = inlined_call_operand.hbm [shape: f32[2,8,128], index: 17, kind: output, shape index: {}]
  %s18 = sld [smem:[#allocation0]]
  $region109: #{tpu_custom_call.1} parent=0
    _
  %s20 = ssub.s32 1, %s18
  %s21 = scalar_select 0, %s20, %s18
  $region1: #{tpu_custom_call.1} parent=0
    #allocation4 [shape = 'u8[8192]{0}', space=vmem, size = 0x2000, scoped, tag = 'output window, operand 0, single buffered']
    #allocation5 [shape = 's32[2]{0}', space=sflag, size = 0x8, scoped, tag = 'scoped memory for tpu_custom_call.1']
    %22 = vsyncpa [#allocation5], 0
    loop: start=0, step=1, limit=4
    $region2: #{tpu_custom_call.1} parent=1 // loop_pre_header
      _
    $region3: #{tpu_custom_call.1} parent=1 // loop_header
      %s24 = sphi 0, %s28
      %p25 = scmp.ge.s32.totalorder %s24, 4
      %s31 = sphi 0, %s43
      %s32 = sphi 0, %s39
      %s33 = sphi 0, %s31
      %s34 = sphi 0, %s32
      %s35 = sphi 0, %s33
      %s36 = sphi 0, %s34
      %s46 = sphi 0, %s48
      %s49 = sphi 0, %s46
      %s50 = sphi 0, %s49
      %s66 = sphi 0, %s50
      %s70 = sphi 0, %s70
      %s72 = sphi 0, %s70
      %s73 = sphi 0, %s72
      %s87 = sphi 0, %s73
      %s93 = sphi 0, %s95
      %s96 = sphi 0, %s93
      %s97 = sphi 0, %s96
      %s113 = sphi 0, %s97
      %s119 = sphi 0, %s121
      %s122 = sphi 0, %s119
      %s123 = sphi 0, %s122
      %s139 = sphi 0, %s123
      %s145 = sphi 0, %s147
      %s148 = sphi 0, %s145
      %s149 = sphi 0, %s148
      %s165 = sphi 0, %s149
      %s171 = sphi 0, %s173
      %s174 = sphi 0, %s171
      %s175 = sphi 0, %s174
      %s191 = sphi 0, %s175
      %s197 = sphi 0, %s199
      %s200 = sphi 0, %s197
      %s201 = sphi 0, %s200
      %s217 = sphi 0, %s201
      %s223 = sphi 0, %s225
      %s226 = sphi 0, %s223
      %s227 = sphi 0, %s226
      %s243 = sphi 0, %s227
      %s249 = sphi 0, %s251
      %s252 = sphi 0, %s249
      %s253 = sphi 0, %s252
      %s269 = sphi 0, %s253
      %s275 = sphi 0, %s277
      %s278 = sphi 0, %s275
      %s279 = sphi 0, %s278
      %s295 = sphi 0, %s279
      %s301 = sphi 0, %s303
      %s304 = sphi 0, %s301
      %s305 = sphi 0, %s304
      %s321 = sphi 0, %s305
      %s327 = sphi 0, %s329
      %s330 = sphi 0, %s327
      %s331 = sphi 0, %s330
      %s347 = sphi 0, %s331
      %s353 = sphi 0, %s355
      %s356 = sphi 0, %s353
      %s357 = sphi 0, %s356
      %s373 = sphi 0, %s357
      %s377 = sphi 0, %s377
      %s379 = sphi 0, %s377
      %s380 = sphi 0, %s379
      %s394 = sphi 0, %s380
      %s398 = sphi 0, %s398
      %s400 = sphi 0, %s398
      %s401 = sphi 0, %s400
      %s415 = sphi 0, %s401
      %s419 = sphi 0, %s419
      %s421 = sphi 0, %s419
      %s422 = sphi 0, %s421
      %s436 = sphi 0, %s422
      %s440 = sphi 0, %s440
      %s442 = sphi 0, %s440
      %s443 = sphi 0, %s442
      %s457 = sphi 0, %s443
      %s463 = sphi 0, %s465
      %s466 = sphi 0, %s463
      %s467 = sphi 0, %s466
      %s483 = sphi 0, %s467
    $region4: #{tpu_custom_call.1} parent=1 // loop_header_branch
      %27 = sbr.rel (%p25) target = $region8
    $region5: #{tpu_custom_call.1} parent=1 // loop_body
      %s29 = ssub.s32 %s24, 1
      %s30 = ssub.s32 %s24, 2
      %s37 = sadd.s32 1, %s32
      %p38 = scmp.ge.s32.totalorder %s37, 2
      %s39 = scalar_select %p38, 0, %s37
      %s40 = sadd.s32 1, %s31
      %s41 = scalar_select %p38, %s40, %s31
      %p42 = scmp.ge.s32.totalorder %s41, 1
      %s43 = scalar_select %p42, 0, %s41
      %s44 = ssub.s32 %s31, %s43
      %p45 = scmp.eq.s32.totalorder %s44, 0
      %s47 = sadd.s32 %s46, 1
      %s48 = scalar_select %p45, %s46, %s47
      %p51 = pneg %p45
      %p52 = scmp.eq.s32.totalorder %s24, 1
      %p53 = por %p51, %p52
      %p54 = scmp.ne.s32.totalorder %s46, %s49
      %p55 = scmp.eq.s32.totalorder %s24, 0
      %p56 = por %p54, %p55
      %p57 = scmp.ne.s32.totalorder %s46, %s49
      %p58 = scmp.eq.s32.totalorder %s29, 1
      %p59 = por %p57, %p58
      %p60 = scmp.ne.s32.totalorder %s49, %s50
      %p61 = scmp.eq.s32.totalorder %s29, 0
      %p62 = por %p60, %p61
      %p63 = scmp.ne.s32.totalorder %s49, %s50
      %p64 = scmp.eq.s32.totalorder %s30, 1
      %p65 = por %p63, %p64
      %p67 = scmp.ne.s32.totalorder %s50, %s66
      %p68 = scmp.eq.s32.totalorder %s30, 0
      %p69 = por %p67, %p68
      %s71 = sadd.s32 %s70, 1
      %p74 = scmp.eq.s32.totalorder %s24, 1
      %p75 = scmp.ne.s32.totalorder %s70, %s72
      %p76 = scmp.eq.s32.totalorder %s24, 0
      %p77 = por %p75, %p76
      %p78 = scmp.ne.s32.totalorder %s70, %s72
      %p79 = scmp.eq.s32.totalorder %s29, 1
      %p80 = por %p78, %p79
      %p81 = scmp.ne.s32.totalorder %s72, %s73
      %p82 = scmp.eq.s32.totalorder %s29, 0
      %p83 = por %p81, %p82
      %p84 = scmp.ne.s32.totalorder %s72, %s73
      %p85 = scmp.eq.s32.totalorder %s30, 1
      %p86 = por %p84, %p85
      %p88 = scmp.ne.s32.totalorder %s73, %s87
      %p89 = scmp.eq.s32.totalorder %s30, 0
      %p90 = por %p88, %p89
      %s91 = ssub.s32 %s32, %s39
      %p92 = scmp.eq.s32.totalorder %s91, 0
      %s94 = sadd.s32 %s93, 1
      %s95 = scalar_select %p92, %s93, %s94
      %p98 = pneg %p92
      %p99 = scmp.eq.s32.totalorder %s24, 1
      %p100 = por %p98, %p99
      %p101 = scmp.ne.s32.totalorder %s93, %s96
      %p102 = scmp.eq.s32.totalorder %s24, 0
      %p103 = por %p101, %p102
      %p104 = scmp.ne.s32.totalorder %s93, %s96
      %p105 = scmp.eq.s32.totalorder %s29, 1
      %p106 = por %p104, %p105
      %p107 = scmp.ne.s32.totalorder %s96, %s97
      %p108 = scmp.eq.s32.totalorder %s29, 0
      %p109 = por %p107, %p108
      %p110 = scmp.ne.s32.totalorder %s96, %s97
      %p111 = scmp.eq.s32.totalorder %s30, 1
      %p112 = por %p110, %p111
      %p114 = scmp.ne.s32.totalorder %s97, %s113
      %p115 = scmp.eq.s32.totalorder %s30, 0
      %p116 = por %p114, %p115
      %s117 = ssub.s32 %s32, %s39
      %p118 = scmp.eq.s32.totalorder %s117, 0
      %s120 = sadd.s32 %s119, 1
      %s121 = scalar_select %p118, %s119, %s120
      %p124 = pneg %p118
      %p125 = scmp.eq.s32.totalorder %s24, 1
      %p126 = por %p124, %p125
      %p127 = scmp.ne.s32.totalorder %s119, %s122
      %p128 = scmp.eq.s32.totalorder %s24, 0
      %p129 = por %p127, %p128
      %p130 = scmp.ne.s32.totalorder %s119, %s122
      %p131 = scmp.eq.s32.totalorder %s29, 1
      %p132 = por %p130, %p131
      %p133 = scmp.ne.s32.totalorder %s122, %s123
      %p134 = scmp.eq.s32.totalorder %s29, 0
      %p135 = por %p133, %p134
      %p136 = scmp.ne.s32.totalorder %s122, %s123
      %p137 = scmp.eq.s32.totalorder %s30, 1
      %p138 = por %p136, %p137
      %p140 = scmp.ne.s32.totalorder %s123, %s139
      %p141 = scmp.eq.s32.totalorder %s30, 0
      %p142 = por %p140, %p141
      %s143 = ssub.s32 %s32, %s39
      %p144 = scmp.eq.s32.totalorder %s143, 0
      %s146 = sadd.s32 %s145, 1
      %s147 = scalar_select %p144, %s145, %s146
      %p150 = pneg %p144
      %p151 = scmp.eq.s32.totalorder %s24, 1
      %p152 = por %p150, %p151
      %p153 = scmp.ne.s32.totalorder %s145, %s148
      %p154 = scmp.eq.s32.totalorder %s24, 0
      %p155 = por %p153, %p154
      %p156 = scmp.ne.s32.totalorder %s145, %s148
      %p157 = scmp.eq.s32.totalorder %s29, 1
      %p158 = por %p156, %p157
      %p159 = scmp.ne.s32.totalorder %s148, %s149
      %p160 = scmp.eq.s32.totalorder %s29, 0
      %p161 = por %p159, %p160
      %p162 = scmp.ne.s32.totalorder %s148, %s149
      %p163 = scmp.eq.s32.totalorder %s30, 1
      %p164 = por %p162, %p163
      %p166 = scmp.ne.s32.totalorder %s149, %s165
      %p167 = scmp.eq.s32.totalorder %s30, 0
      %p168 = por %p166, %p167
      %s169 = ssub.s32 %s32, %s39
      %p170 = scmp.eq.s32.totalorder %s169, 0
      %s172 = sadd.s32 %s171, 1
      %s173 = scalar_select %p170, %s171, %s172
      %p176 = pneg %p170
      %p177 = scmp.eq.s32.totalorder %s24, 1
      %p178 = por %p176, %p177
      %p179 = scmp.ne.s32.totalorder %s171, %s174
      %p180 = scmp.eq.s32.totalorder %s24, 0
      %p181 = por %p179, %p180
      %p182 = scmp.ne.s32.totalorder %s171, %s174
      %p183 = scmp.eq.s32.totalorder %s29, 1
      %p184 = por %p182, %p183
      %p185 = scmp.ne.s32.totalorder %s174, %s175
      %p186 = scmp.eq.s32.totalorder %s29, 0
      %p187 = por %p185, %p186
      %p188 = scmp.ne.s32.totalorder %s174, %s175
      %p189 = scmp.eq.s32.totalorder %s30, 1
      %p190 = por %p188, %p189
      %p192 = scmp.ne.s32.totalorder %s175, %s191
      %p193 = scmp.eq.s32.totalorder %s30, 0
      %p194 = por %p192, %p193
      %s195 = ssub.s32 %s32, %s39
      %p196 = scmp.eq.s32.totalorder %s195, 0
      %s198 = sadd.s32 %s197, 1
      %s199 = scalar_select %p196, %s197, %s198
      %p202 = pneg %p196
      %p203 = scmp.eq.s32.totalorder %s24, 1
      %p204 = por %p202, %p203
      %p205 = scmp.ne.s32.totalorder %s197, %s200
      %p206 = scmp.eq.s32.totalorder %s24, 0
      %p207 = por %p205, %p206
      %p208 = scmp.ne.s32.totalorder %s197, %s200
      %p209 = scmp.eq.s32.totalorder %s29, 1
      %p210 = por %p208, %p209
      %p211 = scmp.ne.s32.totalorder %s200, %s201
      %p212 = scmp.eq.s32.totalorder %s29, 0
      %p213 = por %p211, %p212
      %p214 = scmp.ne.s32.totalorder %s200, %s201
      %p215 = scmp.eq.s32.totalorder %s30, 1
      %p216 = por %p214, %p215
      %p218 = scmp.ne.s32.totalorder %s201, %s217
      %p219 = scmp.eq.s32.totalorder %s30, 0
      %p220 = por %p218, %p219
      %s221 = ssub.s32 %s32, %s39
      %p222 = scmp.eq.s32.totalorder %s221, 0
      %s224 = sadd.s32 %s223, 1
      %s225 = scalar_select %p222, %s223, %s224
      %p228 = pneg %p222
      %p229 = scmp.eq.s32.totalorder %s24, 1
      %p230 = por %p228, %p229
      %p231 = scmp.ne.s32.totalorder %s223, %s226
      %p232 = scmp.eq.s32.totalorder %s24, 0
      %p233 = por %p231, %p232
      %p234 = scmp.ne.s32.totalorder %s223, %s226
      %p235 = scmp.eq.s32.totalorder %s29, 1
      %p236 = por %p234, %p235
      %p237 = scmp.ne.s32.totalorder %s226, %s227
      %p238 = scmp.eq.s32.totalorder %s29, 0
      %p239 = por %p237, %p238
      %p240 = scmp.ne.s32.totalorder %s226, %s227
      %p241 = scmp.eq.s32.totalorder %s30, 1
      %p242 = por %p240, %p241
      %p244 = scmp.ne.s32.totalorder %s227, %s243
      %p245 = scmp.eq.s32.totalorder %s30, 0
      %p246 = por %p244, %p245
      %s247 = ssub.s32 %s32, %s39
      %p248 = scmp.eq.s32.totalorder %s247, 0
      %s250 = sadd.s32 %s249, 1
      %s251 = scalar_select %p248, %s249, %s250
      %p254 = pneg %p248
      %p255 = scmp.eq.s32.totalorder %s24, 1
      %p256 = por %p254, %p255
      %p257 = scmp.ne.s32.totalorder %s249, %s252
      %p258 = scmp.eq.s32.totalorder %s24, 0
      %p259 = por %p257, %p258
      %p260 = scmp.ne.s32.totalorder %s249, %s252
      %p261 = scmp.eq.s32.totalorder %s29, 1
      %p262 = por %p260, %p261
      %p263 = scmp.ne.s32.totalorder %s252, %s253
      %p264 = scmp.eq.s32.totalorder %s29, 0
      %p265 = por %p263, %p264
      %p266 = scmp.ne.s32.totalorder %s252, %s253
      %p267 = scmp.eq.s32.totalorder %s30, 1
      %p268 = por %p266, %p267
      %p270 = scmp.ne.s32.totalorder %s253, %s269
      %p271 = scmp.eq.s32.totalorder %s30, 0
      %p272 = por %p270, %p271
      %s273 = ssub.s32 %s32, %s39
      %p274 = scmp.eq.s32.totalorder %s273, 0
      %s276 = sadd.s32 %s275, 1
      %s277 = scalar_select %p274, %s275, %s276
      %p280 = pneg %p274
      %p281 = scmp.eq.s32.totalorder %s24, 1
      %p282 = por %p280, %p281
      %p283 = scmp.ne.s32.totalorder %s275, %s278
      %p284 = scmp.eq.s32.totalorder %s24, 0
      %p285 = por %p283, %p284
      %p286 = scmp.ne.s32.totalorder %s275, %s278
      %p287 = scmp.eq.s32.totalorder %s29, 1
      %p288 = por %p286, %p287
      %p289 = scmp.ne.s32.totalorder %s278, %s279
      %p290 = scmp.eq.s32.totalorder %s29, 0
      %p291 = por %p289, %p290
      %p292 = scmp.ne.s32.totalorder %s278, %s279
      %p293 = scmp.eq.s32.totalorder %s30, 1
      %p294 = por %p292, %p293
      %p296 = scmp.ne.s32.totalorder %s279, %s295
      %p297 = scmp.eq.s32.totalorder %s30, 0
      %p298 = por %p296, %p297
      %s299 = ssub.s32 %s32, %s39
      %p300 = scmp.eq.s32.totalorder %s299, 0
      %s302 = sadd.s32 %s301, 1
      %s303 = scalar_select %p300, %s301, %s302
      %p306 = pneg %p300
      %p307 = scmp.eq.s32.totalorder %s24, 1
      %p308 = por %p306, %p307
      %p309 = scmp.ne.s32.totalorder %s301, %s304
      %p310 = scmp.eq.s32.totalorder %s24, 0
      %p311 = por %p309, %p310
      %p312 = scmp.ne.s32.totalorder %s301, %s304
      %p313 = scmp.eq.s32.totalorder %s29, 1
      %p314 = por %p312, %p313
      %p315 = scmp.ne.s32.totalorder %s304, %s305
      %p316 = scmp.eq.s32.totalorder %s29, 0
      %p317 = por %p315, %p316
      %p318 = scmp.ne.s32.totalorder %s304, %s305
      %p319 = scmp.eq.s32.totalorder %s30, 1
      %p320 = por %p318, %p319
      %p322 = scmp.ne.s32.totalorder %s305, %s321
      %p323 = scmp.eq.s32.totalorder %s30, 0
      %p324 = por %p322, %p323
      %s325 = ssub.s32 %s32, %s39
      %p326 = scmp.eq.s32.totalorder %s325, 0
      %s328 = sadd.s32 %s327, 1
      %s329 = scalar_select %p326, %s327, %s328
      %p332 = pneg %p326
      %p333 = scmp.eq.s32.totalorder %s24, 1
      %p334 = por %p332, %p333
      %p335 = scmp.ne.s32.totalorder %s327, %s330
      %p336 = scmp.eq.s32.totalorder %s24, 0
      %p337 = por %p335, %p336
      %p338 = scmp.ne.s32.totalorder %s327, %s330
      %p339 = scmp.eq.s32.totalorder %s29, 1
      %p340 = por %p338, %p339
      %p341 = scmp.ne.s32.totalorder %s330, %s331
      %p342 = scmp.eq.s32.totalorder %s29, 0
      %p343 = por %p341, %p342
      %p344 = scmp.ne.s32.totalorder %s330, %s331
      %p345 = scmp.eq.s32.totalorder %s30, 1
      %p346 = por %p344, %p345
      %p348 = scmp.ne.s32.totalorder %s331, %s347
      %p349 = scmp.eq.s32.totalorder %s30, 0
      %p350 = por %p348, %p349
      %s351 = ssub.s32 %s32, %s39
      %p352 = scmp.eq.s32.totalorder %s351, 0
      %s354 = sadd.s32 %s353, 1
      %s355 = scalar_select %p352, %s353, %s354
      %p358 = pneg %p352
      %p359 = scmp.eq.s32.totalorder %s24, 1
      %p360 = por %p358, %p359
      %p361 = scmp.ne.s32.totalorder %s353, %s356
      %p362 = scmp.eq.s32.totalorder %s24, 0
      %p363 = por %p361, %p362
      %p364 = scmp.ne.s32.totalorder %s353, %s356
      %p365 = scmp.eq.s32.totalorder %s29, 1
      %p366 = por %p364, %p365
      %p367 = scmp.ne.s32.totalorder %s356, %s357
      %p368 = scmp.eq.s32.totalorder %s29, 0
      %p369 = por %p367, %p368
      %p370 = scmp.ne.s32.totalorder %s356, %s357
      %p371 = scmp.eq.s32.totalorder %s30, 1
      %p372 = por %p370, %p371
      %p374 = scmp.ne.s32.totalorder %s357, %s373
      %p375 = scmp.eq.s32.totalorder %s30, 0
      %p376 = por %p374, %p375
      %s378 = sadd.s32 %s377, 1
      %p381 = scmp.eq.s32.totalorder %s24, 1
      %p382 = scmp.ne.s32.totalorder %s377, %s379
      %p383 = scmp.eq.s32.totalorder %s24, 0
      %p384 = por %p382, %p383
      %p385 = scmp.ne.s32.totalorder %s377, %s379
      %p386 = scmp.eq.s32.totalorder %s29, 1
      %p387 = por %p385, %p386
      %p388 = scmp.ne.s32.totalorder %s379, %s380
      %p389 = scmp.eq.s32.totalorder %s29, 0
      %p390 = por %p388, %p389
      %p391 = scmp.ne.s32.totalorder %s379, %s380
      %p392 = scmp.eq.s32.totalorder %s30, 1
      %p393 = por %p391, %p392
      %p395 = scmp.ne.s32.totalorder %s380, %s394
      %p396 = scmp.eq.s32.totalorder %s30, 0
      %p397 = por %p395, %p396
      %s399 = sadd.s32 %s398, 1
      %p402 = scmp.eq.s32.totalorder %s24, 1
      %p403 = scmp.ne.s32.totalorder %s398, %s400
      %p404 = scmp.eq.s32.totalorder %s24, 0
      %p405 = por %p403, %p404
      %p406 = scmp.ne.s32.totalorder %s398, %s400
      %p407 = scmp.eq.s32.totalorder %s29, 1
      %p408 = por %p406, %p407
      %p409 = scmp.ne.s32.totalorder %s400, %s401
      %p410 = scmp.eq.s32.totalorder %s29, 0
      %p411 = por %p409, %p410
      %p412 = scmp.ne.s32.totalorder %s400, %s401
      %p413 = scmp.eq.s32.totalorder %s30, 1
      %p414 = por %p412, %p413
      %p416 = scmp.ne.s32.totalorder %s401, %s415
      %p417 = scmp.eq.s32.totalorder %s30, 0
      %p418 = por %p416, %p417
      %s420 = sadd.s32 %s419, 1
      %p423 = scmp.eq.s32.totalorder %s24, 1
      %p424 = scmp.ne.s32.totalorder %s419, %s421
      %p425 = scmp.eq.s32.totalorder %s24, 0
      %p426 = por %p424, %p425
      %p427 = scmp.ne.s32.totalorder %s419, %s421
      %p428 = scmp.eq.s32.totalorder %s29, 1
      %p429 = por %p427, %p428
      %p430 = scmp.ne.s32.totalorder %s421, %s422
      %p431 = scmp.eq.s32.totalorder %s29, 0
      %p432 = por %p430, %p431
      %p433 = scmp.ne.s32.totalorder %s421, %s422
      %p434 = scmp.eq.s32.totalorder %s30, 1
      %p435 = por %p433, %p434
      %p437 = scmp.ne.s32.totalorder %s422, %s436
      %p438 = scmp.eq.s32.totalorder %s30, 0
      %p439 = por %p437, %p438
      %s441 = sadd.s32 %s440, 1
      %p444 = scmp.eq.s32.totalorder %s24, 1
      %p445 = scmp.ne.s32.totalorder %s440, %s442
      %p446 = scmp.eq.s32.totalorder %s24, 0
      %p447 = por %p445, %p446
      %p448 = scmp.ne.s32.totalorder %s440, %s442
      %p449 = scmp.eq.s32.totalorder %s29, 1
      %p450 = por %p448, %p449
      %p451 = scmp.ne.s32.totalorder %s442, %s443
      %p452 = scmp.eq.s32.totalorder %s29, 0
      %p453 = por %p451, %p452
      %p454 = scmp.ne.s32.totalorder %s442, %s443
      %p455 = scmp.eq.s32.totalorder %s30, 1
      %p456 = por %p454, %p455
      %p458 = scmp.ne.s32.totalorder %s443, %s457
      %p459 = scmp.eq.s32.totalorder %s30, 0
      %p460 = por %p458, %p459
      %s461 = ssub.s32 %s31, %s43
      %p462 = scmp.eq.s32.totalorder %s461, 0
      %s464 = sadd.s32 %s463, 1
      %s465 = scalar_select %p462, %s463, %s464
      %p468 = pneg %p462
      %p469 = scmp.eq.s32.totalorder %s24, 1
      %p470 = por %p468, %p469
      %p471 = scmp.ne.s32.totalorder %s463, %s466
      %p472 = scmp.eq.s32.totalorder %s24, 0
      %p473 = por %p471, %p472
      %p474 = scmp.ne.s32.totalorder %s463, %s466
      %p475 = scmp.eq.s32.totalorder %s29, 1
      %p476 = por %p474, %p475
      %p477 = scmp.ne.s32.totalorder %s466, %s467
      %p478 = scmp.eq.s32.totalorder %s29, 0
      %p479 = por %p477, %p478
      %p480 = scmp.ne.s32.totalorder %s466, %s467
      %p481 = scmp.eq.s32.totalorder %s30, 1
      %p482 = por %p480, %p481
      %p484 = scmp.ne.s32.totalorder %s467, %s483
      %p485 = scmp.eq.s32.totalorder %s30, 0
      %p486 = por %p484, %p485
      %p487 = scmp.le.s32.totalorder 1, %s24
      %p488 = scmp.lt.s32.totalorder %s24, 3
      %p489 = pnand %p487, %p488
      %p490 = pneg %p489
      // Predicated region
      $region9: #{tpu_custom_call.1} parent=5 // pred_check
        _
      $region10: #{tpu_custom_call.1} parent=5 // pred_check_branch
        %492 = sbr.rel (%p489) target = $region12
      $region11: #{tpu_custom_call.1} parent=5 // pred_region
        %s493 = ssub.s32 %s24, 1
        // Predicated region
        $region13: #{tpu_custom_call.1} parent=11 // pred_check
          %p494 = pneg %p62
        $region14: #{tpu_custom_call.1} parent=11 // pred_check_branch
          %496 = sbr.rel (%p494) target = $region16
        $region15: #{tpu_custom_call.1} parent=11 // pred_region
          %s497 = smul.u32 2, %s33
          %p498 = scmp.lt.s32.totalorder %s497, 1
          %s499 = scalar_select %p498, %s497, 1
          %s500 = smul.addr %s499, 8
          %s501 = scalar_lea.vmem %s0, %s500
          %s502 = smul.u32 2, %s33
        $region16: #{tpu_custom_call.1} parent=11 // pred_fallthru
          _
        // Predicated region
        $region17: #{tpu_custom_call.1} parent=11 // pred_check
          %p503 = pneg %p83
        $region18: #{tpu_custom_call.1} parent=11 // pred_check_branch
          %505 = sbr.rel (%p503) target = $region20
        $region19: #{tpu_custom_call.1} parent=11 // pred_region
          _
        $region20: #{tpu_custom_call.1} parent=11 // pred_fallthru
          _
        // Predicated region
        $region21: #{tpu_custom_call.1} parent=11 // pred_check
          %p506 = pneg %p390
        $region22: #{tpu_custom_call.1} parent=11 // pred_check_branch
          %508 = sbr.rel (%p506) target = $region24
        $region23: #{tpu_custom_call.1} parent=11 // pred_region
          _
        $region24: #{tpu_custom_call.1} parent=11 // pred_fallthru
          _
        // Predicated region
        $region25: #{tpu_custom_call.1} parent=11 // pred_check
          %p509 = pneg %p411
        $region26: #{tpu_custom_call.1} parent=11 // pred_check_branch
          %511 = sbr.rel (%p509) target = $region28
        $region27: #{tpu_custom_call.1} parent=11 // pred_region
          _
        $region28: #{tpu_custom_call.1} parent=11 // pred_fallthru
          _
        // Predicated region
        $region29: #{tpu_custom_call.1} parent=11 // pred_check
          %p512 = pneg %p432
        $region30: #{tpu_custom_call.1} parent=11 // pred_check_branch
          %514 = sbr.rel (%p512) target = $region32
        $region31: #{tpu_custom_call.1} parent=11 // pred_region
          _
        $region32: #{tpu_custom_call.1} parent=11 // pred_fallthru
          _
        // Predicated region
        $region33: #{tpu_custom_call.1} parent=11 // pred_check
          %p515 = pneg %p453
        $region34: #{tpu_custom_call.1} parent=11 // pred_check_branch
          %517 = sbr.rel (%p515) target = $region36
        $region35: #{tpu_custom_call.1} parent=11 // pred_region
          _
        $region36: #{tpu_custom_call.1} parent=11 // pred_fallthru
          _
      $region12: #{tpu_custom_call.1} parent=5 // pred_fallthru
        _
      %p518 = scmp.lt.s32.totalorder %s24, 2
      // Predicated region
      $region37: #{tpu_custom_call.1} parent=5 // pred_check
        %p519 = pneg %p518
      $region38: #{tpu_custom_call.1} parent=5 // pred_check_branch
        %521 = sbr.rel (%p519) target = $region40
      $region39: #{tpu_custom_call.1} parent=5 // pred_region
        // Predicated region
        $region41: #{tpu_custom_call.1} parent=39 // pred_check
          %p522 = pneg %p103
        $region42: #{tpu_custom_call.1} parent=39 // pred_check_branch
          %524 = sbr.rel (%p522) target = $region44
        $region43: #{tpu_custom_call.1} parent=39 // pred_region
          %p525 = scmp.lt.s32.totalorder %s32, 1
          %s526 = scalar_select %p525, %s32, 1
          %s527 = scalar_lea.vmem %s2, %s526
        $region44: #{tpu_custom_call.1} parent=39 // pred_fallthru
          _
        // Predicated region
        $region45: #{tpu_custom_call.1} parent=39 // pred_check
          %p528 = pneg %p129
        $region46: #{tpu_custom_call.1} parent=39 // pred_check_branch
          %530 = sbr.rel (%p528) target = $region48
        $region47: #{tpu_custom_call.1} parent=39 // pred_region
          %p531 = scmp.lt.s32.totalorder %s32, 1
          %s532 = scalar_select %p531, %s32, 1
          %s533 = scalar_lea.vmem %s3, %s532
        $region48: #{tpu_custom_call.1} parent=39 // pred_fallthru
          _
        // Predicated region
        $region49: #{tpu_custom_call.1} parent=39 // pred_check
          %p534 = pneg %p155
        $region50: #{tpu_custom_call.1} parent=39 // pred_check_branch
          %536 = sbr.rel (%p534) target = $region52
        $region51: #{tpu_custom_call.1} parent=39 // pred_region
          %p537 = scmp.lt.s32.totalorder %s32, 1
          %s538 = scalar_select %p537, %s32, 1
          %s539 = scalar_lea.vmem %s4, %s538
        $region52: #{tpu_custom_call.1} parent=39 // pred_fallthru
          _
        // Predicated region
        $region53: #{tpu_custom_call.1} parent=39 // pred_check
          %p540 = pneg %p181
        $region54: #{tpu_custom_call.1} parent=39 // pred_check_branch
          %542 = sbr.rel (%p540) target = $region56
        $region55: #{tpu_custom_call.1} parent=39 // pred_region
          %p543 = scmp.lt.s32.totalorder %s32, 1
          %s544 = scalar_select %p543, %s32, 1
          %s545 = scalar_lea.vmem %s5, %s544
        $region56: #{tpu_custom_call.1} parent=39 // pred_fallthru
          _
        // Predicated region
        $region57: #{tpu_custom_call.1} parent=39 // pred_check
          %p546 = pneg %p207
        $region58: #{tpu_custom_call.1} parent=39 // pred_check_branch
          %548 = sbr.rel (%p546) target = $region60
        $region59: #{tpu_custom_call.1} parent=39 // pred_region
          %p549 = scmp.lt.s32.totalorder %s32, 1
          %s550 = scalar_select %p549, %s32, 1
          %s551 = smul.addr %s550, 4
          %s552 = smul.addr %s551, 4
          %s553 = scalar_lea.vmem %s6, %s552
        $region60: #{tpu_custom_call.1} parent=39 // pred_fallthru
          _
        // Predicated region
        $region61: #{tpu_custom_call.1} parent=39 // pred_check
          %p554 = pneg %p233
        $region62: #{tpu_custom_call.1} parent=39 // pred_check_branch
          %556 = sbr.rel (%p554) target = $region64
        $region63: #{tpu_custom_call.1} parent=39 // pred_region
          %p557 = scmp.lt.s32.totalorder %s32, 1
          %s558 = scalar_select %p557, %s32, 1
          %s559 = smul.addr %s558, 4
          %s560 = smul.addr %s559, 4
          %s561 = scalar_lea.vmem %s7, %s560
        $region64: #{tpu_custom_call.1} parent=39 // pred_fallthru
          _
        // Predicated region
        $region65: #{tpu_custom_call.1} parent=39 // pred_check
          %p562 = pneg %p259
        $region66: #{tpu_custom_call.1} parent=39 // pred_check_branch
          %564 = sbr.rel (%p562) target = $region68
        $region67: #{tpu_custom_call.1} parent=39 // pred_region
          %p565 = scmp.lt.s32.totalorder %s32, 1
          %s566 = scalar_select %p565, %s32, 1
          %s567 = scalar_lea.vmem %s8, %s566
        $region68: #{tpu_custom_call.1} parent=39 // pred_fallthru
          _
        // Predicated region
        $region69: #{tpu_custom_call.1} parent=39 // pred_check
          %p568 = pneg %p285
        $region70: #{tpu_custom_call.1} parent=39 // pred_check_branch
          %570 = sbr.rel (%p568) target = $region72
        $region71: #{tpu_custom_call.1} parent=39 // pred_region
          %p571 = scmp.lt.s32.totalorder %s32, 1
          %s572 = scalar_select %p571, %s32, 1
          %s573 = smul.addr %s572, 4
          %s574 = smul.addr %s573, 4
          %s575 = scalar_lea.vmem %s9, %s574
        $region72: #{tpu_custom_call.1} parent=39 // pred_fallthru
          _
        // Predicated region
        $region73: #{tpu_custom_call.1} parent=39 // pred_check
          %p576 = pneg %p311
        $region74: #{tpu_custom_call.1} parent=39 // pred_check_branch
          %578 = sbr.rel (%p576) target = $region76
        $region75: #{tpu_custom_call.1} parent=39 // pred_region
          %p579 = scmp.lt.s32.totalorder %s32, 1
          %s580 = scalar_select %p579, %s32, 1
          %s581 = scalar_lea.vmem %s10, %s580
        $region76: #{tpu_custom_call.1} parent=39 // pred_fallthru
          _
        // Predicated region
        $region77: #{tpu_custom_call.1} parent=39 // pred_check
          %p582 = pneg %p337
        $region78: #{tpu_custom_call.1} parent=39 // pred_check_branch
          %584 = sbr.rel (%p582) target = $region80
        $region79: #{tpu_custom_call.1} parent=39 // pred_region
          %p585 = scmp.lt.s32.totalorder %s32, 1
          %s586 = scalar_select %p585, %s32, 1
          %s587 = smul.addr %s586, 16
          %s588 = smul.addr %s587, 4
          %s589 = scalar_lea.vmem %s11, %s588
        $region80: #{tpu_custom_call.1} parent=39 // pred_fallthru
          _
        // Predicated region
        $region81: #{tpu_custom_call.1} parent=39 // pred_check
          %p590 = pneg %p363
        $region82: #{tpu_custom_call.1} parent=39 // pred_check_branch
          %592 = sbr.rel (%p590) target = $region84
        $region83: #{tpu_custom_call.1} parent=39 // pred_region
          %p593 = scmp.lt.s32.totalorder %s32, 1
          %s594 = scalar_select %p593, %s32, 1
          %s595 = scalar_lea.vmem %s12, %s594
        $region84: #{tpu_custom_call.1} parent=39 // pred_fallthru
          _
      $region40: #{tpu_custom_call.1} parent=5 // pred_fallthru
        _
      %p596 = scmp.le.s32.totalorder 1, %s24
      %p597 = scmp.lt.s32.totalorder %s24, 3
      %p598 = pnand %p596, %p597
      %p599 = pneg %p598
      // Predicated region
      $region85: #{tpu_custom_call.1} parent=5 // pred_check
        _
      $region86: #{tpu_custom_call.1} parent=5 // pred_check_branch
        %601 = sbr.rel (%p598) target = $region88
      $region87: #{tpu_custom_call.1} parent=5 // pred_region
        %s602 = ssub.s32 %s24, 1
        %s603 = smul.u32 2, %s33
        %p604 = scmp.lt.s32.totalorder %s603, 1
        %s605 = scalar_select %p604, %s603, 1
        %s606 = smul.addr %s605, 8
        %s607 = scalar_lea.vmem %s0, %s606
        %p608 = pneg %p62
        %p609 = pneg %p59
        %p610 = pneg %p83
        %p611 = pneg %p80
        %p612 = scmp.lt.s32.totalorder %s34, 1
        %s613 = scalar_select %p612, %s34, 1
        %s614 = scalar_lea.vmem %s2, %s613
        %p615 = pneg %p109
        %p616 = pneg %p106
        %p617 = scmp.lt.s32.totalorder %s34, 1
        %s618 = scalar_select %p617, %s34, 1
        %s619 = scalar_lea.vmem %s3, %s618
        %p620 = pneg %p135
        %p621 = pneg %p132
        %p622 = scmp.lt.s32.totalorder %s34, 1
        %s623 = scalar_select %p622, %s34, 1
        %s624 = scalar_lea.vmem %s4, %s623
        %p625 = pneg %p161
        %p626 = pneg %p158
        %p627 = scmp.lt.s32.totalorder %s34, 1
        %s628 = scalar_select %p627, %s34, 1
        %s629 = scalar_lea.vmem %s5, %s628
        %p630 = pneg %p187
        %p631 = pneg %p184
        %p632 = scmp.lt.s32.totalorder %s34, 1
        %s633 = scalar_select %p632, %s34, 1
        %s634 = smul.addr %s633, 4
        %s635 = smul.addr %s634, 4
        %s636 = scalar_lea.vmem %s6, %s635
        %p637 = pneg %p213
        %p638 = pneg %p210
        %p639 = scmp.lt.s32.totalorder %s34, 1
        %s640 = scalar_select %p639, %s34, 1
        %s641 = smul.addr %s640, 4
        %s642 = smul.addr %s641, 4
        %s643 = scalar_lea.vmem %s7, %s642
        %p644 = pneg %p239
        %p645 = pneg %p236
        %p646 = scmp.lt.s32.totalorder %s34, 1
        %s647 = scalar_select %p646, %s34, 1
        %s648 = scalar_lea.vmem %s8, %s647
        %p649 = pneg %p265
        %p650 = pneg %p262
        %p651 = scmp.lt.s32.totalorder %s34, 1
        %s652 = scalar_select %p651, %s34, 1
        %s653 = smul.addr %s652, 4
        %s654 = smul.addr %s653, 4
        %s655 = scalar_lea.vmem %s9, %s654
        %p656 = pneg %p291
        %p657 = pneg %p288
        %p658 = scmp.lt.s32.totalorder %s34, 1
        %s659 = scalar_select %p658, %s34, 1
        %s660 = scalar_lea.vmem %s10, %s659
        %p661 = pneg %p317
        %p662 = pneg %p314
        %p663 = scmp.lt.s32.totalorder %s34, 1
        %s664 = scalar_select %p663, %s34, 1
        %s665 = smul.addr %s664, 16
        %s666 = smul.addr %s665, 4
        %s667 = scalar_lea.vmem %s11, %s666
        %p668 = pneg %p343
        %p669 = pneg %p340
        %p670 = scmp.lt.s32.totalorder %s34, 1
        %s671 = scalar_select %p670, %s34, 1
        %s672 = scalar_lea.vmem %s12, %s671
        %p673 = pneg %p369
        %p674 = pneg %p366
        %p675 = pneg %p390
        %p676 = pneg %p387
        %p677 = pneg %p411
        %p678 = pneg %p408
        %p679 = pneg %p432
        %p680 = pneg %p429
        %p681 = pneg %p453
        %p682 = pneg %p450
        %p683 = pneg %p479
        %p684 = pneg %p476
        %s685 = smul.u32 2, %s33
        %p686 = scmp.lt.s32.totalorder %s685, 1
        %s687 = scalar_select %p686, %s685, 1
        %s688 = smul.addr %s687, 8
        %s689 = scalar_lea.vmem %s0, %s688
        %s690 = smul.u32 2, %s33
        %p691 = scmp.lt.s32.totalorder %s34, 1
        %s692 = scalar_select %p691, %s34, 1
        %s693 = scalar_lea.vmem %s2, %s692
        %p694 = scmp.lt.s32.totalorder %s34, 1
        %s695 = scalar_select %p694, %s34, 1
        %s696 = scalar_lea.vmem %s3, %s695
        %p697 = scmp.lt.s32.totalorder %s34, 1
        %s698 = scalar_select %p697, %s34, 1
        %s699 = scalar_lea.vmem %s4, %s698
        %p700 = scmp.lt.s32.totalorder %s34, 1
        %s701 = scalar_select %p700, %s34, 1
        %s702 = scalar_lea.vmem %s5, %s701
        %p703 = scmp.lt.s32.totalorder %s34, 1
        %s704 = scalar_select %p703, %s34, 1
        %s705 = smul.addr %s704, 4
        %s706 = smul.addr %s705, 4
        %s707 = scalar_lea.vmem %s6, %s706
        %p708 = scmp.lt.s32.totalorder %s34, 1
        %s709 = scalar_select %p708, %s34, 1
        %s710 = smul.addr %s709, 4
        %s711 = smul.addr %s710, 4
        %s712 = scalar_lea.vmem %s7, %s711
        %p713 = scmp.lt.s32.totalorder %s34, 1
        %s714 = scalar_select %p713, %s34, 1
        %s715 = scalar_lea.vmem %s8, %s714
        %p716 = scmp.lt.s32.totalorder %s34, 1
        %s717 = scalar_select %p716, %s34, 1
        %s718 = smul.addr %s717, 4
        %s719 = smul.addr %s718, 4
        %s720 = scalar_lea.vmem %s9, %s719
        %p721 = scmp.lt.s32.totalorder %s34, 1
        %s722 = scalar_select %p721, %s34, 1
        %s723 = scalar_lea.vmem %s10, %s722
        %p724 = scmp.lt.s32.totalorder %s34, 1
        %s725 = scalar_select %p724, %s34, 1
        %s726 = smul.addr %s725, 16
        %s727 = smul.addr %s726, 4
        %s728 = scalar_lea.vmem %s11, %s727
        %p729 = scmp.lt.s32.totalorder %s34, 1
        %s730 = scalar_select %p729, %s34, 1
        %s731 = scalar_lea.vmem %s12, %s730
        %s732 = smul.u32 2, %s33
        %p734 = scmp.eq.s32.totalorder %s34, 0
        // Predicated region
        $region89: #{tpu_custom_call.1} parent=87 // pred_check
          %p735 = pneg %p734
        $region90: #{tpu_custom_call.1} parent=87 // pred_check_branch
          %737 = sbr.rel (%p735) target = $region92
        $region91: #{tpu_custom_call.1} parent=87 // pred_region
          %v738 = vld [vmem:[%s689] sm:$0xff]
          %v739 = vld [vmem:[%s689 + $0x8] sm:$0xff]
          %vm740 = vcmask 261120
          %741 = vst.msk [vmem:[#allocation2] sm:$0xff] %vm740, %v738
          %742 = vst.msk [vmem:[#allocation2 + $0x8] sm:$0xff] %vm740, %v739
        $region92: #{tpu_custom_call.1} parent=87 // pred_fallthru
          _
        %v743 = vld [vmem:[#allocation2] sm:$0xff]
        %v744 = vld [vmem:[#allocation2 + $0x8] sm:$0xff]
        %v745 = vld [vmem:[%s1] sm:$0xff]
        %v746 = vld [vmem:[%s693] sm:$0x1]
        %v747 = vld [vmem:[%s696] sm:$0x1]
        %vm748 = vcmask 261120
        %v749 = vsel %vm748, %v743, 0.0
        %750 = vadd.xlane.f32.xlu0 %v749
        %v751 = vpop.xlane.xlu0 %750
        %v752 = vsel %vm748, %v744, 0.0
        %753 = vadd.xlane.f32.xlu0 %v752
        %v754 = vpop.xlane.xlu0 %753
        %v755 = vrcp.pop 32.0
        %v756 = vmul.f32 %v751, %v755
        %v757 = vmul.f32 %v754, %v755
        %v758 = vsub.f32 %v743, %v756
        %v759 = vsub.f32 %v744, %v757
        %v760 = vmul.f32 %v758, %v758
        %v761 = vmul.f32 %v759, %v759
        %v762 = vsel %vm748, %v760, 0.0
        %763 = vadd.xlane.f32.xlu0 %v762
        %v764 = vpop.xlane.xlu0 %763
        %v765 = vsel %vm748, %v761, 0.0
        %766 = vadd.xlane.f32.xlu0 %v765
        %v767 = vpop.xlane.xlu0 %766
        %v768 = vmul.f32 %v764, %v755
        %v769 = vmul.f32 %v767, %v755
        %v770 = vadd.f32 %v768, 1e-05
        %v771 = vadd.f32 %v769, 1e-05
        %v772 = vrsqrt.pop %v770
        %v773 = vrsqrt.pop %v771
        %v774 = vmul.f32 %v758, %v772
        %v775 = vmul.f32 %v759, %v773
        %v777 = vlaneseq
        %v778 = vshrl.u32 %v777, 7
        %v779 = vsub.s32 0, %v778
        %v780 = vrot.slane %v746, %v779
        %v782 = vmul.f32 %v774, %v780
        %v783 = vmul.f32 %v775, %v780
        %v785 = vlaneseq
        %v786 = vshrl.u32 %v785, 7
        %v787 = vsub.s32 0, %v786
        %v788 = vrot.slane %v747, %v787
        %v790 = vadd.f32 %v782, %v788
        %v791 = vadd.f32 %v783, %v788
        %v792 = vld [vmem:[%s707] sm:$0xf]
        %v793 = vld [vmem:[%s707 + $0x4] sm:$0xf]
        %v794 = vld [vmem:[%s707 + $0x8] sm:$0xf]
        %v795 = vld [vmem:[%s707 + $0xc] sm:$0xf]
        %v796 = vpack.c.bf16 %v791, %v790
        %v801 = vunpack.c.l.b16 %v792
        %v802 = vunpack.c.l.b16 %v793
        %v803 = vunpack.c.l.b16 %v794
        %v804 = vunpack.c.l.b16 %v795
        %v805 = vpack.c.b16 %v802, %v801
        %v806 = vpack.c.b16 %v804, %v803
        %v810 = vsel %vm748, %v796, 0
        %812 = vmatprep.subr.bf16.mxu0 0
        %813 = vmatpush1.bf16.msra.mxu0 0
        %814 = vmatprep.subr.bf16.mxu0 0
        %815 = vmatpush1.bf16.msra.mxu0 0
        %816 = vmatprep.subr.bf16.mxu0 0
        %817 = vmatpush1.bf16.msra.mxu0 0
        %818 = vmatprep.subr.bf16.mxu0 0
        %819 = vmatpush1.bf16.msra.mxu0 0
        %820 = vmatprep.subr.bf16.mxu0 0
        %821 = vmatpush1.bf16.msra.mxu0 0
        %822 = vmatprep.subr.bf16.mxu0 0
        %823 = vmatpush1.bf16.msra.mxu0 0
        %824 = vmatprep.subr.bf16.mxu0 0
        %825 = vmatpush1.bf16.msra.mxu0 %v806
        %826 = vmatprep.subr.bf16.mxu0 0
        %827 = vmatpush1.bf16.msra.mxu0 %v805
        %828 = vmatprep.subr.bf16.mxu0 0
        %829 = vmatpush2.bf16.msra.mxu0 0
        %830 = vmatprep.subr.bf16.mxu0 0
        %831 = vmatpush2.bf16.msra.mxu0 0
        %832 = vmatprep.subr.bf16.mxu0 0
        %833 = vmatpush2.bf16.msra.mxu0 0
        %834 = vmatprep.subr.bf16.mxu0 0
        %835 = vmatpush2.bf16.msra.mxu0 0
        %836 = vmatprep.subr.bf16.mxu0 0
        %837 = vmatpush2.bf16.msra.mxu0 0
        %838 = vmatprep.subr.bf16.mxu0 0
        %839 = vmatpush2.bf16.msra.mxu0 0
        %840 = vmatprep.subr.bf16.mxu0 0
        %841 = vmatpush2.bf16.msra.mxu0 0
        %842 = vmatprep.subr.bf16.mxu0 0
        %843 = vmatpush2.bf16.msra.mxu0 0
        %844 = vmatprep.mubr.bf16.mxu0 0
        %845 = vmatmul.mubr.bf16.gmra.mxu0 %v810
        %v846 = vpop.f32.mrf.mxu0
        %v847 = vadd.f32 0.0, %v846
        %v848 = vpop.f32.mrf.mxu0
        %v849 = vpop.f32.mrf.mxu0
        %v850 = vadd.f32 0.0, %v849
        %v851 = vpop.f32.mrf.mxu0
        %852 = vdwg.mxu0
        %v853 = vpack.c.bf16 %v847, %v847
        %v854 = vpack.c.bf16 %v850, %v850
        %856 = vrot.lane.b32.xlu0 %v853, 96
        %v857 = vpop.permute.xlu0 %856
        %vm858 = vcmask 64512
        %v860 = vsel %vm858, %v853, 0
        %v863 = vsel %vm858, %v857, 0
        %865 = vmatprep.subr.bf16.mxu0 0
        %866 = vmatpush1.bf16.xpose.msra.mxu0 0
        %867 = vmatprep.subr.bf16.mxu0 0
        %868 = vmatpush1.bf16.xpose.msra.mxu0 0
        %869 = vmatprep.subr.bf16.mxu0 0
        %870 = vmatpush1.bf16.xpose.msra.mxu0 0
        %871 = vmatprep.subr.bf16.mxu0 0
        %872 = vmatpush1.bf16.xpose.msra.mxu0 0
        %873 = vmatprep.subr.bf16.mxu0 0
        %874 = vmatpush1.bf16.xpose.msra.mxu0 0
        %875 = vmatprep.subr.bf16.mxu0 0
        %876 = vmatpush1.bf16.xpose.msra.mxu0 0
        %877 = vmatprep.subr.bf16.mxu0 0
        %878 = vmatpush1.bf16.xpose.msra.mxu0 0
        %879 = vmatprep.subr.bf16.mxu0 0
        %880 = vmatpush1.bf16.xpose.msra.mxu0 %v863
        %881 = vmatprep.subr.bf16.mxu0 0
        %882 = vmatpush2.bf16.xpose.msra.mxu0 0
        %883 = vmatprep.subr.bf16.mxu0 0
        %884 = vmatpush2.bf16.xpose.msra.mxu0 0
        %885 = vmatprep.subr.bf16.mxu0 0
        %886 = vmatpush2.bf16.xpose.msra.mxu0 0
        %887 = vmatprep.subr.bf16.mxu0 0
        %888 = vmatpush2.bf16.xpose.msra.mxu0 0
        %889 = vmatprep.subr.bf16.mxu0 0
        %890 = vmatpush2.bf16.xpose.msra.mxu0 0
        %891 = vmatprep.subr.bf16.mxu0 0
        %892 = vmatpush2.bf16.xpose.msra.mxu0 0
        %893 = vmatprep.subr.bf16.mxu0 0
        %894 = vmatpush2.bf16.xpose.msra.mxu0 0
        %895 = vmatprep.subr.bf16.mxu0 0
        %896 = vmatpush2.bf16.xpose.msra.mxu0 0
        %897 = vmatprep.mubr.bf16.mxu0 0
        %898 = vmatmul.mubr.bf16.gmra.mxu0 %v860
        %v899 = vpop.f32.mrf.mxu0
        %v900 = vadd.f32 %v745, %v899
        %v901 = vpop.f32.mrf.mxu0
        %v902 = vpop.f32.mrf.mxu0
        %v903 = vpop.f32.mrf.mxu0
        %904 = vdwg.mxu0
        %906 = vrot.lane.b32.xlu0 %v854, 96
        %v907 = vpop.permute.xlu0 %906
        %v909 = vsel %vm858, %v854, 0
        %v912 = vsel %vm858, %v907, 0
        %914 = vmatprep.subr.bf16.mxu0 0
        %915 = vmatpush1.bf16.xpose.msra.mxu0 0
        %916 = vmatprep.subr.bf16.mxu0 0
        %917 = vmatpush1.bf16.xpose.msra.mxu0 0
        %918 = vmatprep.subr.bf16.mxu0 0
        %919 = vmatpush1.bf16.xpose.msra.mxu0 0
        %920 = vmatprep.subr.bf16.mxu0 0
        %921 = vmatpush1.bf16.xpose.msra.mxu0 0
        %922 = vmatprep.subr.bf16.mxu0 0
        %923 = vmatpush1.bf16.xpose.msra.mxu0 0
        %924 = vmatprep.subr.bf16.mxu0 0
        %925 = vmatpush1.bf16.xpose.msra.mxu0 0
        %926 = vmatprep.subr.bf16.mxu0 0
        %927 = vmatpush1.bf16.xpose.msra.mxu0 0
        %928 = vmatprep.subr.bf16.mxu0 0
        %929 = vmatpush1.bf16.xpose.msra.mxu0 %v912
        %930 = vmatprep.subr.bf16.mxu0 0
        %931 = vmatpush2.bf16.xpose.msra.mxu0 0
        %932 = vmatprep.subr.bf16.mxu0 0
        %933 = vmatpush2.bf16.xpose.msra.mxu0 0
        %934 = vmatprep.subr.bf16.mxu0 0
        %935 = vmatpush2.bf16.xpose.msra.mxu0 0
        %936 = vmatprep.subr.bf16.mxu0 0
        %937 = vmatpush2.bf16.xpose.msra.mxu0 0
        %938 = vmatprep.subr.bf16.mxu0 0
        %939 = vmatpush2.bf16.xpose.msra.mxu0 0
        %940 = vmatprep.subr.bf16.mxu0 0
        %941 = vmatpush2.bf16.xpose.msra.mxu0 0
        %942 = vmatprep.subr.bf16.mxu0 0
        %943 = vmatpush2.bf16.xpose.msra.mxu0 0
        %944 = vmatprep.subr.bf16.mxu0 0
        %945 = vmatpush2.bf16.xpose.msra.mxu0 0
        %946 = vmatprep.mubr.bf16.mxu0 0
        %947 = vmatmul.mubr.bf16.gmra.mxu0 %v909
        %v948 = vpop.f32.mrf.mxu0
        %v949 = vadd.f32 %v745, %v948
        %v950 = vpop.f32.mrf.mxu0
        %v951 = vpop.f32.mrf.mxu0
        %v952 = vpop.f32.mrf.mxu0
        %953 = vdwg.mxu0
        %v954 = vsel %vm858, %v900, -inf
        %955 = vmax.xlane.f32.xlu0 %v954
        %v956 = vpop.xlane.xlu0 %955
        %v957 = vsel %vm858, %v949, -inf
        %958 = vmax.xlane.f32.xlu0 %v957
        %v959 = vpop.xlane.xlu0 %958
        %v960 = vsub.f32 %v900, %v956
        %v961 = vsub.f32 %v949, %v959
        %v962 = vmul.f32 %v960, 1.442695
        %v963 = vpow.pop %v962
        %v964 = vmul.f32 %v961, 1.442695
        %v965 = vpow.pop %v964
        %v966 = vsel %vm858, %v963, 0.0
        %967 = vadd.xlane.f32.xlu0 %v966
        %v968 = vpop.xlane.xlu0 %967
        %v969 = vsel %vm858, %v965, 0.0
        %970 = vadd.xlane.f32.xlu0 %v969
        %v971 = vpop.xlane.xlu0 %970
        %v972 = vrcp.pop %v968
        %v973 = vrcp.pop %v971
        %v974 = vmul.f32 %v963, %v972
        %v975 = vmul.f32 %v965, %v973
        %v976 = vpack.c.bf16 %v974, %v974
        %v977 = vpack.c.bf16 %v975, %v975
        %978 = vrot.lane.b32.xlu0 %v853, 64
        %v979 = vpop.permute.xlu0 %978
        %v981 = vsel %vm858, %v976, 0
        %vm983 = vcmask 1043456
        %v985 = vsel %vm983, %v979, 0
        %987 = vmatprep.subr.bf16.mxu0 0
        %988 = vmatpush1.bf16.msra.mxu0 0
        %989 = vmatprep.subr.bf16.mxu0 0
        %990 = vmatpush1.bf16.msra.mxu0 0
        %991 = vmatprep.subr.bf16.mxu0 0
        %992 = vmatpush1.bf16.msra.mxu0 0
        %993 = vmatprep.subr.bf16.mxu0 0
        %994 = vmatpush1.bf16.msra.mxu0 0
        %995 = vmatprep.subr.bf16.mxu0 0
        %996 = vmatpush1.bf16.msra.mxu0 0
        %997 = vmatprep.subr.bf16.mxu0 0
        %998 = vmatpush1.bf16.msra.mxu0 0
        %999 = vmatprep.subr.bf16.mxu0 0
        %1000 = vmatpush1.bf16.msra.mxu0 0
        %1001 = vmatprep.subr.bf16.mxu0 0
        %1002 = vmatpush1.bf16.msra.mxu0 %v985
        %1003 = vmatprep.subr.bf16.mxu0 0
        %1004 = vmatpush2.bf16.msra.mxu0 0
        %1005 = vmatprep.subr.bf16.mxu0 0
        %1006 = vmatpush2.bf16.msra.mxu0 0
        %1007 = vmatprep.subr.bf16.mxu0 0
        %1008 = vmatpush2.bf16.msra.mxu0 0
        %1009 = vmatprep.subr.bf16.mxu0 0
        %1010 = vmatpush2.bf16.msra.mxu0 0
        %1011 = vmatprep.subr.bf16.mxu0 0
        %1012 = vmatpush2.bf16.msra.mxu0 0
        %1013 = vmatprep.subr.bf16.mxu0 0
        %1014 = vmatpush2.bf16.msra.mxu0 0
        %1015 = vmatprep.subr.bf16.mxu0 0
        %1016 = vmatpush2.bf16.msra.mxu0 0
        %1017 = vmatprep.subr.bf16.mxu0 0
        %1018 = vmatpush2.bf16.msra.mxu0 0
        %1019 = vmatprep.mubr.bf16.mxu0 0
        %1020 = vmatmul.mubr.bf16.gmra.mxu0 %v981
        %v1021 = vpop.f32.mrf.mxu0
        %v1022 = vadd.f32 0.0, %v1021
        %v1023 = vpop.f32.mrf.mxu0
        %v1024 = vpop.f32.mrf.mxu0
        %v1025 = vpop.f32.mrf.mxu0
        %1026 = vdwg.mxu0
        %1027 = vrot.lane.b32.xlu0 %v854, 64
        %v1028 = vpop.permute.xlu0 %1027
        %v1030 = vsel %vm858, %v977, 0
        %v1033 = vsel %vm983, %v1028, 0
        %1035 = vmatprep.subr.bf16.mxu0 0
        %1036 = vmatpush1.bf16.msra.mxu0 0
        %1037 = vmatprep.subr.bf16.mxu0 0
        %1038 = vmatpush1.bf16.msra.mxu0 0
        %1039 = vmatprep.subr.bf16.mxu0 0
        %1040 = vmatpush1.bf16.msra.mxu0 0
        %1041 = vmatprep.subr.bf16.mxu0 0
        %1042 = vmatpush1.bf16.msra.mxu0 0
        %1043 = vmatprep.subr.bf16.mxu0 0
        %1044 = vmatpush1.bf16.msra.mxu0 0
        %1045 = vmatprep.subr.bf16.mxu0 0
        %1046 = vmatpush1.bf16.msra.mxu0 0
        %1047 = vmatprep.subr.bf16.mxu0 0
        %1048 = vmatpush1.bf16.msra.mxu0 0
        %1049 = vmatprep.subr.bf16.mxu0 0
        %1050 = vmatpush1.bf16.msra.mxu0 %v1033
        %1051 = vmatprep.subr.bf16.mxu0 0
        %1052 = vmatpush2.bf16.msra.mxu0 0
        %1053 = vmatprep.subr.bf16.mxu0 0
        %1054 = vmatpush2.bf16.msra.mxu0 0
        %1055 = vmatprep.subr.bf16.mxu0 0
        %1056 = vmatpush2.bf16.msra.mxu0 0
        %1057 = vmatprep.subr.bf16.mxu0 0
        %1058 = vmatpush2.bf16.msra.mxu0 0
        %1059 = vmatprep.subr.bf16.mxu0 0
        %1060 = vmatpush2.bf16.msra.mxu0 0
        %1061 = vmatprep.subr.bf16.mxu0 0
        %1062 = vmatpush2.bf16.msra.mxu0 0
        %1063 = vmatprep.subr.bf16.mxu0 0
        %1064 = vmatpush2.bf16.msra.mxu0 0
        %1065 = vmatprep.subr.bf16.mxu0 0
        %1066 = vmatpush2.bf16.msra.mxu0 0
        %1067 = vmatprep.mubr.bf16.mxu0 0
        %1068 = vmatmul.mubr.bf16.gmra.mxu0 %v1030
        %v1069 = vpop.f32.mrf.mxu0
        %v1070 = vadd.f32 0.0, %v1069
        %v1071 = vpop.f32.mrf.mxu0
        %v1072 = vpop.f32.mrf.mxu0
        %v1073 = vpop.f32.mrf.mxu0
        %1074 = vdwg.mxu0
        %1075 = vst.msk [vmem:[#allocation3] sm:$0xff] %vm858, %v1022
        %1076 = vst.msk [vmem:[#allocation3 + $0x8] sm:$0xff] %vm858, %v1070
        %1077 = vrot.lane.b32.xlu0 %v853, 120
        %v1078 = vpop.permute.xlu0 %1077
        %1079 = vrot.lane.b32.xlu0 %v853, 88
        %v1080 = vpop.permute.xlu0 %1079
        %v1082 = vsel %vm858, %v1078, 0
        %v1085 = vsel %vm858, %v1080, 0
        %1087 = vmatprep.subr.bf16.mxu0 0
        %1088 = vmatpush1.bf16.xpose.msra.mxu0 0
        %1089 = vmatprep.subr.bf16.mxu0 0
        %1090 = vmatpush1.bf16.xpose.msra.mxu0 0
        %1091 = vmatprep.subr.bf16.mxu0 0
        %1092 = vmatpush1.bf16.xpose.msra.mxu0 0
        %1093 = vmatprep.subr.bf16.mxu0 0
        %1094 = vmatpush1.bf16.xpose.msra.mxu0 0
        %1095 = vmatprep.subr.bf16.mxu0 0
        %1096 = vmatpush1.bf16.xpose.msra.mxu0 0
        %1097 = vmatprep.subr.bf16.mxu0 0
        %1098 = vmatpush1.bf16.xpose.msra.mxu0 0
        %1099 = vmatprep.subr.bf16.mxu0 0
        %1100 = vmatpush1.bf16.xpose.msra.mxu0 0
        %1101 = vmatprep.subr.bf16.mxu0 0
        %1102 = vmatpush1.bf16.xpose.msra.mxu0 %v1085
        %1103 = vmatprep.subr.bf16.mxu0 0
        %1104 = vmatpush2.bf16.xpose.msra.mxu0 0
        %1105 = vmatprep.subr.bf16.mxu0 0
        %1106 = vmatpush2.bf16.xpose.msra.mxu0 0
        %1107 = vmatprep.subr.bf16.mxu0 0
        %1108 = vmatpush2.bf16.xpose.msra.mxu0 0
        %1109 = vmatprep.subr.bf16.mxu0 0
        %1110 = vmatpush2.bf16.xpose.msra.mxu0 0
        %1111 = vmatprep.subr.bf16.mxu0 0
        %1112 = vmatpush2.bf16.xpose.msra.mxu0 0
        %1113 = vmatprep.subr.bf16.mxu0 0
        %1114 = vmatpush2.bf16.xpose.msra.mxu0 0
        %1115 = vmatprep.subr.bf16.mxu0 0
        %1116 = vmatpush2.bf16.xpose.msra.mxu0 0
        %1117 = vmatprep.subr.bf16.mxu0 0
        %1118 = vmatpush2.bf16.xpose.msra.mxu0 0
        %1119 = vmatprep.mubr.bf16.mxu0 0
        %1120 = vmatmul.mubr.bf16.gmra.mxu0 %v1082
        %v1121 = vpop.f32.mrf.mxu0
        %v1122 = vadd.f32 %v745, %v1121
        %v1123 = vpop.f32.mrf.mxu0
        %v1124 = vpop.f32.mrf.mxu0
        %v1125 = vpop.f32.mrf.mxu0
        %1126 = vdwg.mxu0
        %1127 = vrot.lane.b32.xlu0 %v854, 120
        %v1128 = vpop.permute.xlu0 %1127
        %1129 = vrot.lane.b32.xlu0 %v854, 88
        %v1130 = vpop.permute.xlu0 %1129
        %v1132 = vsel %vm858, %v1128, 0
        %v1135 = vsel %vm858, %v1130, 0
        %1137 = vmatprep.subr.bf16.mxu0 0
        %1138 = vmatpush1.bf16.xpose.msra.mxu0 0
        %1139 = vmatprep.subr.bf16.mxu0 0
        %1140 = vmatpush1.bf16.xpose.msra.mxu0 0
        %1141 = vmatprep.subr.bf16.mxu0 0
        %1142 = vmatpush1.bf16.xpose.msra.mxu0 0
        %1143 = vmatprep.subr.bf16.mxu0 0
        %1144 = vmatpush1.bf16.xpose.msra.mxu0 0
        %1145 = vmatprep.subr.bf16.mxu0 0
        %1146 = vmatpush1.bf16.xpose.msra.mxu0 0
        %1147 = vmatprep.subr.bf16.mxu0 0
        %1148 = vmatpush1.bf16.xpose.msra.mxu0 0
        %1149 = vmatprep.subr.bf16.mxu0 0
        %1150 = vmatpush1.bf16.xpose.msra.mxu0 0
        %1151 = vmatprep.subr.bf16.mxu0 0
        %1152 = vmatpush1.bf16.xpose.msra.mxu0 %v1135
        %1153 = vmatprep.subr.bf16.mxu0 0
        %1154 = vmatpush2.bf16.xpose.msra.mxu0 0
        %1155 = vmatprep.subr.bf16.mxu0 0
        %1156 = vmatpush2.bf16.xpose.msra.mxu0 0
        %1157 = vmatprep.subr.bf16.mxu0 0
        %1158 = vmatpush2.bf16.xpose.msra.mxu0 0
        %1159 = vmatprep.subr.bf16.mxu0 0
        %1160 = vmatpush2.bf16.xpose.msra.mxu0 0
        %1161 = vmatprep.subr.bf16.mxu0 0
        %1162 = vmatpush2.bf16.xpose.msra.mxu0 0
        %1163 = vmatprep.subr.bf16.mxu0 0
        %1164 = vmatpush2.bf16.xpose.msra.mxu0 0
        %1165 = vmatprep.subr.bf16.mxu0 0
        %1166 = vmatpush2.bf16.xpose.msra.mxu0 0
        %1167 = vmatprep.subr.bf16.mxu0 0
        %1168 = vmatpush2.bf16.xpose.msra.mxu0 0
        %1169 = vmatprep.mubr.bf16.mxu0 0
        %1170 = vmatmul.mubr.bf16.gmra.mxu0 %v1132
        %v1171 = vpop.f32.mrf.mxu0
        %v1172 = vadd.f32 %v745, %v1171
        %v1173 = vpop.f32.mrf.mxu0
        %v1174 = vpop.f32.mrf.mxu0
        %v1175 = vpop.f32.mrf.mxu0
        %1176 = vdwg.mxu0
        %v1177 = vsel %vm858, %v1122, -inf
        %1178 = vmax.xlane.f32.xlu0 %v1177
        %v1179 = vpop.xlane.xlu0 %1178
        %v1180 = vsel %vm858, %v1172, -inf
        %1181 = vmax.xlane.f32.xlu0 %v1180
        %v1182 = vpop.xlane.xlu0 %1181
        %v1183 = vsub.f32 %v1122, %v1179
        %v1184 = vsub.f32 %v1172, %v1182
        %v1185 = vmul.f32 %v1183, 1.442695
        %v1186 = vpow.pop %v1185
        %v1187 = vmul.f32 %v1184, 1.442695
        %v1188 = vpow.pop %v1187
        %v1189 = vsel %vm858, %v1186, 0.0
        %1190 = vadd.xlane.f32.xlu0 %v1189
        %v1191 = vpop.xlane.xlu0 %1190
        %v1192 = vsel %vm858, %v1188, 0.0
        %1193 = vadd.xlane.f32.xlu0 %v1192
        %v1194 = vpop.xlane.xlu0 %1193
        %v1195 = vrcp.pop %v1191
        %v1196 = vrcp.pop %v1194
        %v1197 = vmul.f32 %v1186, %v1195
        %v1198 = vmul.f32 %v1188, %v1196
        %v1199 = vpack.c.bf16 %v1197, %v1197
        %v1200 = vpack.c.bf16 %v1198, %v1198
        %1201 = vrot.lane.b32.xlu0 %v853, 56
        %v1202 = vpop.permute.xlu0 %1201
        %v1204 = vsel %vm858, %v1199, 0
        %v1207 = vsel %vm983, %v1202, 0
        %1209 = vmatprep.subr.bf16.mxu0 0
        %1210 = vmatpush1.bf16.msra.mxu0 0
        %1211 = vmatprep.subr.bf16.mxu0 0
        %1212 = vmatpush1.bf16.msra.mxu0 0
        %1213 = vmatprep.subr.bf16.mxu0 0
        %1214 = vmatpush1.bf16.msra.mxu0 0
        %1215 = vmatprep.subr.bf16.mxu0 0
        %1216 = vmatpush1.bf16.msra.mxu0 0
        %1217 = vmatprep.subr.bf16.mxu0 0
        %1218 = vmatpush1.bf16.msra.mxu0 0
        %1219 = vmatprep.subr.bf16.mxu0 0
        %1220 = vmatpush1.bf16.msra.mxu0 0
        %1221 = vmatprep.subr.bf16.mxu0 0
        %1222 = vmatpush1.bf16.msra.mxu0 0
        %1223 = vmatprep.subr.bf16.mxu0 0
        %1224 = vmatpush1.bf16.msra.mxu0 %v1207
        %1225 = vmatprep.subr.bf16.mxu0 0
        %1226 = vmatpush2.bf16.msra.mxu0 0
        %1227 = vmatprep.subr.bf16.mxu0 0
        %1228 = vmatpush2.bf16.msra.mxu0 0
        %1229 = vmatprep.subr.bf16.mxu0 0
        %1230 = vmatpush2.bf16.msra.mxu0 0
        %1231 = vmatprep.subr.bf16.mxu0 0
        %1232 = vmatpush2.bf16.msra.mxu0 0
        %1233 = vmatprep.subr.bf16.mxu0 0
        %1234 = vmatpush2.bf16.msra.mxu0 0
        %1235 = vmatprep.subr.bf16.mxu0 0
        %1236 = vmatpush2.bf16.msra.mxu0 0
        %1237 = vmatprep.subr.bf16.mxu0 0
        %1238 = vmatpush2.bf16.msra.mxu0 0
        %1239 = vmatprep.subr.bf16.mxu0 0
        %1240 = vmatpush2.bf16.msra.mxu0 0
        %1241 = vmatprep.mubr.bf16.mxu0 0
        %1242 = vmatmul.mubr.bf16.gmra.mxu0 %v1204
        %v1243 = vpop.f32.mrf.mxu0
        %v1244 = vadd.f32 0.0, %v1243
        %v1245 = vpop.f32.mrf.mxu0
        %v1246 = vpop.f32.mrf.mxu0
        %v1247 = vpop.f32.mrf.mxu0
        %1248 = vdwg.mxu0
        %1249 = vrot.lane.b32.xlu0 %v854, 56
        %v1250 = vpop.permute.xlu0 %1249
        %v1252 = vsel %vm858, %v1200, 0
        %v1255 = vsel %vm983, %v1250, 0
        %1257 = vmatprep.subr.bf16.mxu0 0
        %1258 = vmatpush1.bf16.msra.mxu0 0
        %1259 = vmatprep.subr.bf16.mxu0 0
        %1260 = vmatpush1.bf16.msra.mxu0 0
        %1261 = vmatprep.subr.bf16.mxu0 0
        %1262 = vmatpush1.bf16.msra.mxu0 0
        %1263 = vmatprep.subr.bf16.mxu0 0
        %1264 = vmatpush1.bf16.msra.mxu0 0
        %1265 = vmatprep.subr.bf16.mxu0 0
        %1266 = vmatpush1.bf16.msra.mxu0 0
        %1267 = vmatprep.subr.bf16.mxu0 0
        %1268 = vmatpush1.bf16.msra.mxu0 0
        %1269 = vmatprep.subr.bf16.mxu0 0
        %1270 = vmatpush1.bf16.msra.mxu0 0
        %1271 = vmatprep.subr.bf16.mxu0 0
        %1272 = vmatpush1.bf16.msra.mxu0 %v1255
        %1273 = vmatprep.subr.bf16.mxu0 0
        %1274 = vmatpush2.bf16.msra.mxu0 0
        %1275 = vmatprep.subr.bf16.mxu0 0
        %1276 = vmatpush2.bf16.msra.mxu0 0
        %1277 = vmatprep.subr.bf16.mxu0 0
        %1278 = vmatpush2.bf16.msra.mxu0 0
        %1279 = vmatprep.subr.bf16.mxu0 0
        %1280 = vmatpush2.bf16.msra.mxu0 0
        %1281 = vmatprep.subr.bf16.mxu0 0
        %1282 = vmatpush2.bf16.msra.mxu0 0
        %1283 = vmatprep.subr.bf16.mxu0 0
        %1284 = vmatpush2.bf16.msra.mxu0 0
        %1285 = vmatprep.subr.bf16.mxu0 0
        %1286 = vmatpush2.bf16.msra.mxu0 0
        %1287 = vmatprep.subr.bf16.mxu0 0
        %1288 = vmatpush2.bf16.msra.mxu0 0
        %1289 = vmatprep.mubr.bf16.mxu0 0
        %1290 = vmatmul.mubr.bf16.gmra.mxu0 %v1252
        %v1291 = vpop.f32.mrf.mxu0
        %v1292 = vadd.f32 0.0, %v1291
        %v1293 = vpop.f32.mrf.mxu0
        %v1294 = vpop.f32.mrf.mxu0
        %v1295 = vpop.f32.mrf.mxu0
        %1296 = vdwg.mxu0
        %1299 = vrot.lane.b32.xlu0 %v1244, 8
        %v1300 = vpop.permute.xlu0 %1299
        %1301 = vrot.lane.b32.xlu0 %v1292, 8
        %v1302 = vpop.permute.xlu0 %1301
        %vm1305 = vcmask 130112
        %1306 = vst.msk [vmem:[#allocation3] sm:$0xff] %vm1305, %v1300
        %1307 = vst.msk [vmem:[#allocation3 + $0x8] sm:$0xff] %vm1305, %v1302
        %1308 = vrot.lane.b32.xlu0 %v853, 112
        %v1309 = vpop.permute.xlu0 %1308
        %1310 = vrot.lane.b32.xlu0 %v853, 80
        %v1311 = vpop.permute.xlu0 %1310
        %v1313 = vsel %vm858, %v1309, 0
        %v1316 = vsel %vm858, %v1311, 0
        %1318 = vmatprep.subr.bf16.mxu0 0
        %1319 = vmatpush1.bf16.xpose.msra.mxu0 0
        %1320 = vmatprep.subr.bf16.mxu0 0
        %1321 = vmatpush1.bf16.xpose.msra.mxu0 0
        %1322 = vmatprep.subr.bf16.mxu0 0
        %1323 = vmatpush1.bf16.xpose.msra.mxu0 0
        %1324 = vmatprep.subr.bf16.mxu0 0
        %1325 = vmatpush1.bf16.xpose.msra.mxu0 0
        %1326 = vmatprep.subr.bf16.mxu0 0
        %1327 = vmatpush1.bf16.xpose.msra.mxu0 0
        %1328 = vmatprep.subr.bf16.mxu0 0
        %1329 = vmatpush1.bf16.xpose.msra.mxu0 0
        %1330 = vmatprep.subr.bf16.mxu0 0
        %1331 = vmatpush1.bf16.xpose.msra.mxu0 0
        %1332 = vmatprep.subr.bf16.mxu0 0
        %1333 = vmatpush1.bf16.xpose.msra.mxu0 %v1316
        %1334 = vmatprep.subr.bf16.mxu0 0
        %1335 = vmatpush2.bf16.xpose.msra.mxu0 0
        %1336 = vmatprep.subr.bf16.mxu0 0
        %1337 = vmatpush2.bf16.xpose.msra.mxu0 0
        %1338 = vmatprep.subr.bf16.mxu0 0
        %1339 = vmatpush2.bf16.xpose.msra.mxu0 0
        %1340 = vmatprep.subr.bf16.mxu0 0
        %1341 = vmatpush2.bf16.xpose.msra.mxu0 0
        %1342 = vmatprep.subr.bf16.mxu0 0
        %1343 = vmatpush2.bf16.xpose.msra.mxu0 0
        %1344 = vmatprep.subr.bf16.mxu0 0
        %1345 = vmatpush2.bf16.xpose.msra.mxu0 0
        %1346 = vmatprep.subr.bf16.mxu0 0
        %1347 = vmatpush2.bf16.xpose.msra.mxu0 0
        %1348 = vmatprep.subr.bf16.mxu0 0
        %1349 = vmatpush2.bf16.xpose.msra.mxu0 0
        %1350 = vmatprep.mubr.bf16.mxu0 0
        %1351 = vmatmul.mubr.bf16.gmra.mxu0 %v1313
        %v1352 = vpop.f32.mrf.mxu0
        %v1353 = vadd.f32 %v745, %v1352
        %v1354 = vpop.f32.mrf.mxu0
        %v1355 = vpop.f32.mrf.mxu0
        %v1356 = vpop.f32.mrf.mxu0
        %1357 = vdwg.mxu0
        %1358 = vrot.lane.b32.xlu0 %v854, 112
        %v1359 = vpop.permute.xlu0 %1358
        %1360 = vrot.lane.b32.xlu0 %v854, 80
        %v1361 = vpop.permute.xlu0 %1360
        %v1363 = vsel %vm858, %v1359, 0
        %v1366 = vsel %vm858, %v1361, 0
        %1368 = vmatprep.subr.bf16.mxu0 0
        %1369 = vmatpush1.bf16.xpose.msra.mxu0 0
        %1370 = vmatprep.subr.bf16.mxu0 0
        %1371 = vmatpush1.bf16.xpose.msra.mxu0 0
        %1372 = vmatprep.subr.bf16.mxu0 0
        %1373 = vmatpush1.bf16.xpose.msra.mxu0 0
        %1374 = vmatprep.subr.bf16.mxu0 0
        %1375 = vmatpush1.bf16.xpose.msra.mxu0 0
        %1376 = vmatprep.subr.bf16.mxu0 0
        %1377 = vmatpush1.bf16.xpose.msra.mxu0 0
        %1378 = vmatprep.subr.bf16.mxu0 0
        %1379 = vmatpush1.bf16.xpose.msra.mxu0 0
        %1380 = vmatprep.subr.bf16.mxu0 0
        %1381 = vmatpush1.bf16.xpose.msra.mxu0 0
        %1382 = vmatprep.subr.bf16.mxu0 0
        %1383 = vmatpush1.bf16.xpose.msra.mxu0 %v1366
        %1384 = vmatprep.subr.bf16.mxu0 0
        %1385 = vmatpush2.bf16.xpose.msra.mxu0 0
        %1386 = vmatprep.subr.bf16.mxu0 0
        %1387 = vmatpush2.bf16.xpose.msra.mxu0 0
        %1388 = vmatprep.subr.bf16.mxu0 0
        %1389 = vmatpush2.bf16.xpose.msra.mxu0 0
        %1390 = vmatprep.subr.bf16.mxu0 0
        %1391 = vmatpush2.bf16.xpose.msra.mxu0 0
        %1392 = vmatprep.subr.bf16.mxu0 0
        %1393 = vmatpush2.bf16.xpose.msra.mxu0 0
        %1394 = vmatprep.subr.bf16.mxu0 0
        %1395 = vmatpush2.bf16.xpose.msra.mxu0 0
        %1396 = vmatprep.subr.bf16.mxu0 0
        %1397 = vmatpush2.bf16.xpose.msra.mxu0 0
        %1398 = vmatprep.subr.bf16.mxu0 0
        %1399 = vmatpush2.bf16.xpose.msra.mxu0 0
        %1400 = vmatprep.mubr.bf16.mxu0 0
        %1401 = vmatmul.mubr.bf16.gmra.mxu0 %v1363
        %v1402 = vpop.f32.mrf.mxu0
        %v1403 = vadd.f32 %v745, %v1402
        %v1404 = vpop.f32.mrf.mxu0
        %v1405 = vpop.f32.mrf.mxu0
        %v1406 = vpop.f32.mrf.mxu0
        %1407 = vdwg.mxu0
        %v1408 = vsel %vm858, %v1353, -inf
        %1409 = vmax.xlane.f32.xlu0 %v1408
        %v1410 = vpop.xlane.xlu0 %1409
        %v1411 = vsel %vm858, %v1403, -inf
        %1412 = vmax.xlane.f32.xlu0 %v1411
        %v1413 = vpop.xlane.xlu0 %1412
        %v1414 = vsub.f32 %v1353, %v1410
        %v1415 = vsub.f32 %v1403, %v1413
        %v1416 = vmul.f32 %v1414, 1.442695
        %v1417 = vpow.pop %v1416
        %v1418 = vmul.f32 %v1415, 1.442695
        %v1419 = vpow.pop %v1418
        %v1420 = vsel %vm858, %v1417, 0.0
        %1421 = vadd.xlane.f32.xlu0 %v1420
        %v1422 = vpop.xlane.xlu0 %1421
        %v1423 = vsel %vm858, %v1419, 0.0
        %1424 = vadd.xlane.f32.xlu0 %v1423
        %v1425 = vpop.xlane.xlu0 %1424
        %v1426 = vrcp.pop %v1422
        %v1427 = vrcp.pop %v1425
        %v1428 = vmul.f32 %v1417, %v1426
        %v1429 = vmul.f32 %v1419, %v1427
        %v1430 = vpack.c.bf16 %v1428, %v1428
        %v1431 = vpack.c.bf16 %v1429, %v1429
        %1432 = vrot.lane.b32.xlu0 %v853, 48
        %v1433 = vpop.permute.xlu0 %1432
        %v1435 = vsel %vm858, %v1430, 0
        %v1438 = vsel %vm983, %v1433, 0
        %1440 = vmatprep.subr.bf16.mxu0 0
        %1441 = vmatpush1.bf16.msra.mxu0 0
        %1442 = vmatprep.subr.bf16.mxu0 0
        %1443 = vmatpush1.bf16.msra.mxu0 0
        %1444 = vmatprep.subr.bf16.mxu0 0
        %1445 = vmatpush1.bf16.msra.mxu0 0
        %1446 = vmatprep.subr.bf16.mxu0 0
        %1447 = vmatpush1.bf16.msra.mxu0 0
        %1448 = vmatprep.subr.bf16.mxu0 0
        %1449 = vmatpush1.bf16.msra.mxu0 0
        %1450 = vmatprep.subr.bf16.mxu0 0
        %1451 = vmatpush1.bf16.msra.mxu0 0
        %1452 = vmatprep.subr.bf16.mxu0 0
        %1453 = vmatpush1.bf16.msra.mxu0 0
        %1454 = vmatprep.subr.bf16.mxu0 0
        %1455 = vmatpush1.bf16.msra.mxu0 %v1438
        %1456 = vmatprep.subr.bf16.mxu0 0
        %1457 = vmatpush2.bf16.msra.mxu0 0
        %1458 = vmatprep.subr.bf16.mxu0 0
        %1459 = vmatpush2.bf16.msra.mxu0 0
        %1460 = vmatprep.subr.bf16.mxu0 0
        %1461 = vmatpush2.bf16.msra.mxu0 0
        %1462 = vmatprep.subr.bf16.mxu0 0
        %1463 = vmatpush2.bf16.msra.mxu0 0
        %1464 = vmatprep.subr.bf16.mxu0 0
        %1465 = vmatpush2.bf16.msra.mxu0 0
        %1466 = vmatprep.subr.bf16.mxu0 0
        %1467 = vmatpush2.bf16.msra.mxu0 0
        %1468 = vmatprep.subr.bf16.mxu0 0
        %1469 = vmatpush2.bf16.msra.mxu0 0
        %1470 = vmatprep.subr.bf16.mxu0 0
        %1471 = vmatpush2.bf16.msra.mxu0 0
        %1472 = vmatprep.mubr.bf16.mxu0 0
        %1473 = vmatmul.mubr.bf16.gmra.mxu0 %v1435
        %v1474 = vpop.f32.mrf.mxu0
        %v1475 = vadd.f32 0.0, %v1474
        %v1476 = vpop.f32.mrf.mxu0
        %v1477 = vpop.f32.mrf.mxu0
        %v1478 = vpop.f32.mrf.mxu0
        %1479 = vdwg.mxu0
        %1480 = vrot.lane.b32.xlu0 %v854, 48
        %v1481 = vpop.permute.xlu0 %1480
        %v1483 = vsel %vm858, %v1431, 0
        %v1486 = vsel %vm983, %v1481, 0
        %1488 = vmatprep.subr.bf16.mxu0 0
        %1489 = vmatpush1.bf16.msra.mxu0 0
        %1490 = vmatprep.subr.bf16.mxu0 0
        %1491 = vmatpush1.bf16.msra.mxu0 0
        %1492 = vmatprep.subr.bf16.mxu0 0
        %1493 = vmatpush1.bf16.msra.mxu0 0
        %1494 = vmatprep.subr.bf16.mxu0 0
        %1495 = vmatpush1.bf16.msra.mxu0 0
        %1496 = vmatprep.subr.bf16.mxu0 0
        %1497 = vmatpush1.bf16.msra.mxu0 0
        %1498 = vmatprep.subr.bf16.mxu0 0
        %1499 = vmatpush1.bf16.msra.mxu0 0
        %1500 = vmatprep.subr.bf16.mxu0 0
        %1501 = vmatpush1.bf16.msra.mxu0 0
        %1502 = vmatprep.subr.bf16.mxu0 0
        %1503 = vmatpush1.bf16.msra.mxu0 %v1486
        %1504 = vmatprep.subr.bf16.mxu0 0
        %1505 = vmatpush2.bf16.msra.mxu0 0
        %1506 = vmatprep.subr.bf16.mxu0 0
        %1507 = vmatpush2.bf16.msra.mxu0 0
        %1508 = vmatprep.subr.bf16.mxu0 0
        %1509 = vmatpush2.bf16.msra.mxu0 0
        %1510 = vmatprep.subr.bf16.mxu0 0
        %1511 = vmatpush2.bf16.msra.mxu0 0
        %1512 = vmatprep.subr.bf16.mxu0 0
        %1513 = vmatpush2.bf16.msra.mxu0 0
        %1514 = vmatprep.subr.bf16.mxu0 0
        %1515 = vmatpush2.bf16.msra.mxu0 0
        %1516 = vmatprep.subr.bf16.mxu0 0
        %1517 = vmatpush2.bf16.msra.mxu0 0
        %1518 = vmatprep.subr.bf16.mxu0 0
        %1519 = vmatpush2.bf16.msra.mxu0 0
        %1520 = vmatprep.mubr.bf16.mxu0 0
        %1521 = vmatmul.mubr.bf16.gmra.mxu0 %v1483
        %v1522 = vpop.f32.mrf.mxu0
        %v1523 = vadd.f32 0.0, %v1522
        %v1524 = vpop.f32.mrf.mxu0
        %v1525 = vpop.f32.mrf.mxu0
        %v1526 = vpop.f32.mrf.mxu0
        %1527 = vdwg.mxu0
        %1530 = vrot.lane.b32.xlu0 %v1475, 16
        %v1531 = vpop.permute.xlu0 %1530
        %1532 = vrot.lane.b32.xlu0 %v1523, 16
        %v1533 = vpop.permute.xlu0 %1532
        %vm1536 = vcmask 195712
        %1537 = vst.msk [vmem:[#allocation3] sm:$0xff] %vm1536, %v1531
        %1538 = vst.msk [vmem:[#allocation3 + $0x8] sm:$0xff] %vm1536, %v1533
        %1539 = vrot.lane.b32.xlu0 %v853, 104
        %v1540 = vpop.permute.xlu0 %1539
        %1541 = vrot.lane.b32.xlu0 %v853, 72
        %v1542 = vpop.permute.xlu0 %1541
        %v1544 = vsel %vm858, %v1540, 0
        %v1547 = vsel %vm858, %v1542, 0
        %1549 = vmatprep.subr.bf16.mxu0 0
        %1550 = vmatpush1.bf16.xpose.msra.mxu0 0
        %1551 = vmatprep.subr.bf16.mxu0 0
        %1552 = vmatpush1.bf16.xpose.msra.mxu0 0
        %1553 = vmatprep.subr.bf16.mxu0 0
        %1554 = vmatpush1.bf16.xpose.msra.mxu0 0
        %1555 = vmatprep.subr.bf16.mxu0 0
        %1556 = vmatpush1.bf16.xpose.msra.mxu0 0
        %1557 = vmatprep.subr.bf16.mxu0 0
        %1558 = vmatpush1.bf16.xpose.msra.mxu0 0
        %1559 = vmatprep.subr.bf16.mxu0 0
        %1560 = vmatpush1.bf16.xpose.msra.mxu0 0
        %1561 = vmatprep.subr.bf16.mxu0 0
        %1562 = vmatpush1.bf16.xpose.msra.mxu0 0
        %1563 = vmatprep.subr.bf16.mxu0 0
        %1564 = vmatpush1.bf16.xpose.msra.mxu0 %v1547
        %1565 = vmatprep.subr.bf16.mxu0 0
        %1566 = vmatpush2.bf16.xpose.msra.mxu0 0
        %1567 = vmatprep.subr.bf16.mxu0 0
        %1568 = vmatpush2.bf16.xpose.msra.mxu0 0
        %1569 = vmatprep.subr.bf16.mxu0 0
        %1570 = vmatpush2.bf16.xpose.msra.mxu0 0
        %1571 = vmatprep.subr.bf16.mxu0 0
        %1572 = vmatpush2.bf16.xpose.msra.mxu0 0
        %1573 = vmatprep.subr.bf16.mxu0 0
        %1574 = vmatpush2.bf16.xpose.msra.mxu0 0
        %1575 = vmatprep.subr.bf16.mxu0 0
        %1576 = vmatpush2.bf16.xpose.msra.mxu0 0
        %1577 = vmatprep.subr.bf16.mxu0 0
        %1578 = vmatpush2.bf16.xpose.msra.mxu0 0
        %1579 = vmatprep.subr.bf16.mxu0 0
        %1580 = vmatpush2.bf16.xpose.msra.mxu0 0
        %1581 = vmatprep.mubr.bf16.mxu0 0
        %1582 = vmatmul.mubr.bf16.gmra.mxu0 %v1544
        %v1583 = vpop.f32.mrf.mxu0
        %v1584 = vadd.f32 %v745, %v1583
        %v1585 = vpop.f32.mrf.mxu0
        %v1586 = vpop.f32.mrf.mxu0
        %v1587 = vpop.f32.mrf.mxu0
        %1588 = vdwg.mxu0
        %1589 = vrot.lane.b32.xlu0 %v854, 104
        %v1590 = vpop.permute.xlu0 %1589
        %1591 = vrot.lane.b32.xlu0 %v854, 72
        %v1592 = vpop.permute.xlu0 %1591
        %v1594 = vsel %vm858, %v1590, 0
        %v1597 = vsel %vm858, %v1592, 0
        %1599 = vmatprep.subr.bf16.mxu0 0
        %1600 = vmatpush1.bf16.xpose.msra.mxu0 0
        %1601 = vmatprep.subr.bf16.mxu0 0
        %1602 = vmatpush1.bf16.xpose.msra.mxu0 0
        %1603 = vmatprep.subr.bf16.mxu0 0
        %1604 = vmatpush1.bf16.xpose.msra.mxu0 0
        %1605 = vmatprep.subr.bf16.mxu0 0
        %1606 = vmatpush1.bf16.xpose.msra.mxu0 0
        %1607 = vmatprep.subr.bf16.mxu0 0
        %1608 = vmatpush1.bf16.xpose.msra.mxu0 0
        %1609 = vmatprep.subr.bf16.mxu0 0
        %1610 = vmatpush1.bf16.xpose.msra.mxu0 0
        %1611 = vmatprep.subr.bf16.mxu0 0
        %1612 = vmatpush1.bf16.xpose.msra.mxu0 0
        %1613 = vmatprep.subr.bf16.mxu0 0
        %1614 = vmatpush1.bf16.xpose.msra.mxu0 %v1597
        %1615 = vmatprep.subr.bf16.mxu0 0
        %1616 = vmatpush2.bf16.xpose.msra.mxu0 0
        %1617 = vmatprep.subr.bf16.mxu0 0
        %1618 = vmatpush2.bf16.xpose.msra.mxu0 0
        %1619 = vmatprep.subr.bf16.mxu0 0
        %1620 = vmatpush2.bf16.xpose.msra.mxu0 0
        %1621 = vmatprep.subr.bf16.mxu0 0
        %1622 = vmatpush2.bf16.xpose.msra.mxu0 0
        %1623 = vmatprep.subr.bf16.mxu0 0
        %1624 = vmatpush2.bf16.xpose.msra.mxu0 0
        %1625 = vmatprep.subr.bf16.mxu0 0
        %1626 = vmatpush2.bf16.xpose.msra.mxu0 0
        %1627 = vmatprep.subr.bf16.mxu0 0
        %1628 = vmatpush2.bf16.xpose.msra.mxu0 0
        %1629 = vmatprep.subr.bf16.mxu0 0
        %1630 = vmatpush2.bf16.xpose.msra.mxu0 0
        %1631 = vmatprep.mubr.bf16.mxu0 0
        %1632 = vmatmul.mubr.bf16.gmra.mxu0 %v1594
        %v1633 = vpop.f32.mrf.mxu0
        %v1634 = vadd.f32 %v745, %v1633
        %v1635 = vpop.f32.mrf.mxu0
        %v1636 = vpop.f32.mrf.mxu0
        %v1637 = vpop.f32.mrf.mxu0
        %1638 = vdwg.mxu0
        %v1639 = vsel %vm858, %v1584, -inf
        %1640 = vmax.xlane.f32.xlu0 %v1639
        %v1641 = vpop.xlane.xlu0 %1640
        %v1642 = vsel %vm858, %v1634, -inf
        %1643 = vmax.xlane.f32.xlu0 %v1642
        %v1644 = vpop.xlane.xlu0 %1643
        %v1645 = vsub.f32 %v1584, %v1641
        %v1646 = vsub.f32 %v1634, %v1644
        %v1647 = vmul.f32 %v1645, 1.442695
        %v1648 = vpow.pop %v1647
        %v1649 = vmul.f32 %v1646, 1.442695
        %v1650 = vpow.pop %v1649
        %v1651 = vsel %vm858, %v1648, 0.0
        %1652 = vadd.xlane.f32.xlu0 %v1651
        %v1653 = vpop.xlane.xlu0 %1652
        %v1654 = vsel %vm858, %v1650, 0.0
        %1655 = vadd.xlane.f32.xlu0 %v1654
        %v1656 = vpop.xlane.xlu0 %1655
        %v1657 = vrcp.pop %v1653
        %v1658 = vrcp.pop %v1656
        %v1659 = vmul.f32 %v1648, %v1657
        %v1660 = vmul.f32 %v1650, %v1658
        %v1661 = vpack.c.bf16 %v1659, %v1659
        %v1662 = vpack.c.bf16 %v1660, %v1660
        %1663 = vrot.lane.b32.xlu0 %v853, 40
        %v1664 = vpop.permute.xlu0 %1663
        %v1666 = vsel %vm858, %v1661, 0
        %v1669 = vsel %vm983, %v1664, 0
        %1671 = vmatprep.subr.bf16.mxu0 0
        %1672 = vmatpush1.bf16.msra.mxu0 0
        %1673 = vmatprep.subr.bf16.mxu0 0
        %1674 = vmatpush1.bf16.msra.mxu0 0
        %1675 = vmatprep.subr.bf16.mxu0 0
        %1676 = vmatpush1.bf16.msra.mxu0 0
        %1677 = vmatprep.subr.bf16.mxu0 0
        %1678 = vmatpush1.bf16.msra.mxu0 0
        %1679 = vmatprep.subr.bf16.mxu0 0
        %1680 = vmatpush1.bf16.msra.mxu0 0
        %1681 = vmatprep.subr.bf16.mxu0 0
        %1682 = vmatpush1.bf16.msra.mxu0 0
        %1683 = vmatprep.subr.bf16.mxu0 0
        %1684 = vmatpush1.bf16.msra.mxu0 0
        %1685 = vmatprep.subr.bf16.mxu0 0
        %1686 = vmatpush1.bf16.msra.mxu0 %v1669
        %1687 = vmatprep.subr.bf16.mxu0 0
        %1688 = vmatpush2.bf16.msra.mxu0 0
        %1689 = vmatprep.subr.bf16.mxu0 0
        %1690 = vmatpush2.bf16.msra.mxu0 0
        %1691 = vmatprep.subr.bf16.mxu0 0
        %1692 = vmatpush2.bf16.msra.mxu0 0
        %1693 = vmatprep.subr.bf16.mxu0 0
        %1694 = vmatpush2.bf16.msra.mxu0 0
        %1695 = vmatprep.subr.bf16.mxu0 0
        %1696 = vmatpush2.bf16.msra.mxu0 0
        %1697 = vmatprep.subr.bf16.mxu0 0
        %1698 = vmatpush2.bf16.msra.mxu0 0
        %1699 = vmatprep.subr.bf16.mxu0 0
        %1700 = vmatpush2.bf16.msra.mxu0 0
        %1701 = vmatprep.subr.bf16.mxu0 0
        %1702 = vmatpush2.bf16.msra.mxu0 0
        %1703 = vmatprep.mubr.bf16.mxu0 0
        %1704 = vmatmul.mubr.bf16.gmra.mxu0 %v1666
        %v1705 = vpop.f32.mrf.mxu0
        %v1706 = vadd.f32 0.0, %v1705
        %v1707 = vpop.f32.mrf.mxu0
        %v1708 = vpop.f32.mrf.mxu0
        %v1709 = vpop.f32.mrf.mxu0
        %1710 = vdwg.mxu0
        %1711 = vrot.lane.b32.xlu0 %v854, 40
        %v1712 = vpop.permute.xlu0 %1711
        %v1714 = vsel %vm858, %v1662, 0
        %v1717 = vsel %vm983, %v1712, 0
        %1719 = vmatprep.subr.bf16.mxu0 0
        %1720 = vmatpush1.bf16.msra.mxu0 0
        %1721 = vmatprep.subr.bf16.mxu0 0
        %1722 = vmatpush1.bf16.msra.mxu0 0
        %1723 = vmatprep.subr.bf16.mxu0 0
        %1724 = vmatpush1.bf16.msra.mxu0 0
        %1725 = vmatprep.subr.bf16.mxu0 0
        %1726 = vmatpush1.bf16.msra.mxu0 0
        %1727 = vmatprep.subr.bf16.mxu0 0
        %1728 = vmatpush1.bf16.msra.mxu0 0
        %1729 = vmatprep.subr.bf16.mxu0 0
        %1730 = vmatpush1.bf16.msra.mxu0 0
        %1731 = vmatprep.subr.bf16.mxu0 0
        %1732 = vmatpush1.bf16.msra.mxu0 0
        %1733 = vmatprep.subr.bf16.mxu0 0
        %1734 = vmatpush1.bf16.msra.mxu0 %v1717
        %1735 = vmatprep.subr.bf16.mxu0 0
        %1736 = vmatpush2.bf16.msra.mxu0 0
        %1737 = vmatprep.subr.bf16.mxu0 0
        %1738 = vmatpush2.bf16.msra.mxu0 0
        %1739 = vmatprep.subr.bf16.mxu0 0
        %1740 = vmatpush2.bf16.msra.mxu0 0
        %1741 = vmatprep.subr.bf16.mxu0 0
        %1742 = vmatpush2.bf16.msra.mxu0 0
        %1743 = vmatprep.subr.bf16.mxu0 0
        %1744 = vmatpush2.bf16.msra.mxu0 0
        %1745 = vmatprep.subr.bf16.mxu0 0
        %1746 = vmatpush2.bf16.msra.mxu0 0
        %1747 = vmatprep.subr.bf16.mxu0 0
        %1748 = vmatpush2.bf16.msra.mxu0 0
        %1749 = vmatprep.subr.bf16.mxu0 0
        %1750 = vmatpush2.bf16.msra.mxu0 0
        %1751 = vmatprep.mubr.bf16.mxu0 0
        %1752 = vmatmul.mubr.bf16.gmra.mxu0 %v1714
        %v1753 = vpop.f32.mrf.mxu0
        %v1754 = vadd.f32 0.0, %v1753
        %v1755 = vpop.f32.mrf.mxu0
        %v1756 = vpop.f32.mrf.mxu0
        %v1757 = vpop.f32.mrf.mxu0
        %1758 = vdwg.mxu0
        %1761 = vrot.lane.b32.xlu0 %v1706, 24
        %v1762 = vpop.permute.xlu0 %1761
        %1763 = vrot.lane.b32.xlu0 %v1754, 24
        %v1764 = vpop.permute.xlu0 %1763
        %vm1767 = vcmask 261312
        %1768 = vst.msk [vmem:[#allocation3] sm:$0xff] %vm1767, %v1762
        %1769 = vst.msk [vmem:[#allocation3 + $0x8] sm:$0xff] %vm1767, %v1764
        %v1770 = vld [vmem:[#allocation3] sm:$0xff]
        %v1771 = vld [vmem:[#allocation3 + $0x8] sm:$0xff]
        %v1772 = vld [vmem:[%s712] sm:$0xf]
        %v1773 = vld [vmem:[%s712 + $0x4] sm:$0xf]
        %v1774 = vld [vmem:[%s712 + $0x8] sm:$0xf]
        %v1775 = vld [vmem:[%s712 + $0xc] sm:$0xf]
        %v1776 = vpack.c.bf16 %v1771, %v1770
        %v1777 = vld [vmem:[%s715] sm:$0x1]
        %v1779 = vlaneseq
        %v1780 = vshrl.u32 %v1779, 7
        %v1781 = vsub.s32 0, %v1780
        %v1782 = vrot.slane %v1777, %v1781
        %v1788 = vunpack.c.l.b16 %v1772
        %v1789 = vunpack.c.l.b16 %v1773
        %v1790 = vunpack.c.l.b16 %v1774
        %v1791 = vunpack.c.l.b16 %v1775
        %v1792 = vpack.c.b16 %v1789, %v1788
        %v1793 = vpack.c.b16 %v1791, %v1790
        %v1797 = vsel %vm748, %v1776, 0
        %1799 = vmatprep.subr.bf16.mxu0 0
        %1800 = vmatpush1.bf16.msra.mxu0 0
        %1801 = vmatprep.subr.bf16.mxu0 0
        %1802 = vmatpush1.bf16.msra.mxu0 0
        %1803 = vmatprep.subr.bf16.mxu0 0
        %1804 = vmatpush1.bf16.msra.mxu0 0
        %1805 = vmatprep.subr.bf16.mxu0 0
        %1806 = vmatpush1.bf16.msra.mxu0 0
        %1807 = vmatprep.subr.bf16.mxu0 0
        %1808 = vmatpush1.bf16.msra.mxu0 0
        %1809 = vmatprep.subr.bf16.mxu0 0
        %1810 = vmatpush1.bf16.msra.mxu0 0
        %1811 = vmatprep.subr.bf16.mxu0 0
        %1812 = vmatpush1.bf16.msra.mxu0 %v1793
        %1813 = vmatprep.subr.bf16.mxu0 0
        %1814 = vmatpush1.bf16.msra.mxu0 %v1792
        %1815 = vmatprep.subr.bf16.mxu0 0
        %1816 = vmatpush2.bf16.msra.mxu0 0
        %1817 = vmatprep.subr.bf16.mxu0 0
        %1818 = vmatpush2.bf16.msra.mxu0 0
        %1819 = vmatprep.subr.bf16.mxu0 0
        %1820 = vmatpush2.bf16.msra.mxu0 0
        %1821 = vmatprep.subr.bf16.mxu0 0
        %1822 = vmatpush2.bf16.msra.mxu0 0
        %1823 = vmatprep.subr.bf16.mxu0 0
        %1824 = vmatpush2.bf16.msra.mxu0 0
        %1825 = vmatprep.subr.bf16.mxu0 0
        %1826 = vmatpush2.bf16.msra.mxu0 0
        %1827 = vmatprep.subr.bf16.mxu0 0
        %1828 = vmatpush2.bf16.msra.mxu0 0
        %1829 = vmatprep.subr.bf16.mxu0 0
        %1830 = vmatpush2.bf16.msra.mxu0 0
        %1831 = vmatprep.mubr.bf16.mxu0 0
        %1832 = vmatmul.mubr.bf16.gmra.mxu0 %v1797
        %v1833 = vpop.f32.mrf.mxu0
        %v1834 = vadd.f32 %v1782, %v1833
        %v1835 = vpop.f32.mrf.mxu0
        %v1836 = vpop.f32.mrf.mxu0
        %v1837 = vadd.f32 %v1782, %v1836
        %v1838 = vpop.f32.mrf.mxu0
        %1839 = vdwg.mxu0
        %v1840 = vadd.f32 %v743, %v1834
        %v1841 = vadd.f32 %v744, %v1837
        %v1842 = vld [vmem:[%s699] sm:$0x1]
        %v1843 = vld [vmem:[%s702] sm:$0x1]
        %v1844 = vsel %vm748, %v1840, 0.0
        %1845 = vadd.xlane.f32.xlu0 %v1844
        %v1846 = vpop.xlane.xlu0 %1845
        %v1847 = vsel %vm748, %v1841, 0.0
        %1848 = vadd.xlane.f32.xlu0 %v1847
        %v1849 = vpop.xlane.xlu0 %1848
        %v1850 = vmul.f32 %v1846, %v755
        %v1851 = vmul.f32 %v1849, %v755
        %v1852 = vsub.f32 %v1840, %v1850
        %v1853 = vsub.f32 %v1841, %v1851
        %v1854 = vmul.f32 %v1852, %v1852
        %v1855 = vmul.f32 %v1853, %v1853
        %v1856 = vsel %vm748, %v1854, 0.0
        %1857 = vadd.xlane.f32.xlu0 %v1856
        %v1858 = vpop.xlane.xlu0 %1857
        %v1859 = vsel %vm748, %v1855, 0.0
        %1860 = vadd.xlane.f32.xlu0 %v1859
        %v1861 = vpop.xlane.xlu0 %1860
        %v1862 = vmul.f32 %v1858, %v755
        %v1863 = vmul.f32 %v1861, %v755
        %v1864 = vadd.f32 %v1862, 1e-05
        %v1865 = vadd.f32 %v1863, 1e-05
        %v1866 = vrsqrt.pop %v1864
        %v1867 = vrsqrt.pop %v1865
        %v1868 = vmul.f32 %v1852, %v1866
        %v1869 = vmul.f32 %v1853, %v1867
        %v1871 = vlaneseq
        %v1872 = vshrl.u32 %v1871, 7
        %v1873 = vsub.s32 0, %v1872
        %v1874 = vrot.slane %v1842, %v1873
        %v1876 = vmul.f32 %v1868, %v1874
        %v1877 = vmul.f32 %v1869, %v1874
        %v1879 = vlaneseq
        %v1880 = vshrl.u32 %v1879, 7
        %v1881 = vsub.s32 0, %v1880
        %v1882 = vrot.slane %v1843, %v1881
        %v1884 = vadd.f32 %v1876, %v1882
        %v1885 = vadd.f32 %v1877, %v1882
        %v1886 = vld [vmem:[%s720] sm:$0xf]
        %v1887 = vld [vmem:[%s720 + $0x4] sm:$0xf]
        %v1888 = vld [vmem:[%s720 + $0x8] sm:$0xf]
        %v1889 = vld [vmem:[%s720 + $0xc] sm:$0xf]
        %v1890 = vpack.c.bf16 %v1885, %v1884
        %v1891 = vld [vmem:[%s723] sm:$0x1]
        %v1893 = vlaneseq
        %v1894 = vshrl.u32 %v1893, 7
        %v1895 = vsub.s32 0, %v1894
        %v1896 = vrot.slane %v1891, %v1895
        %v1902 = vunpack.c.l.b16 %v1886
        %v1903 = vunpack.c.l.b16 %v1887
        %v1904 = vunpack.c.l.b16 %v1888
        %v1905 = vunpack.c.l.b16 %v1889
        %v1906 = vpack.c.b16 %v1903, %v1902
        %v1907 = vpack.c.b16 %v1905, %v1904
        %v1911 = vsel %vm748, %v1890, 0
        %1913 = vmatprep.subr.bf16.mxu0 0
        %1914 = vmatpush1.bf16.msra.mxu0 0
        %1915 = vmatprep.subr.bf16.mxu0 0
        %1916 = vmatpush1.bf16.msra.mxu0 0
        %1917 = vmatprep.subr.bf16.mxu0 0
        %1918 = vmatpush1.bf16.msra.mxu0 0
        %1919 = vmatprep.subr.bf16.mxu0 0
        %1920 = vmatpush1.bf16.msra.mxu0 0
        %1921 = vmatprep.subr.bf16.mxu0 0
        %1922 = vmatpush1.bf16.msra.mxu0 0
        %1923 = vmatprep.subr.bf16.mxu0 0
        %1924 = vmatpush1.bf16.msra.mxu0 0
        %1925 = vmatprep.subr.bf16.mxu0 0
        %1926 = vmatpush1.bf16.msra.mxu0 %v1907
        %1927 = vmatprep.subr.bf16.mxu0 0
        %1928 = vmatpush1.bf16.msra.mxu0 %v1906
        %1929 = vmatprep.subr.bf16.mxu0 0
        %1930 = vmatpush2.bf16.msra.mxu0 0
        %1931 = vmatprep.subr.bf16.mxu0 0
        %1932 = vmatpush2.bf16.msra.mxu0 0
        %1933 = vmatprep.subr.bf16.mxu0 0
        %1934 = vmatpush2.bf16.msra.mxu0 0
        %1935 = vmatprep.subr.bf16.mxu0 0
        %1936 = vmatpush2.bf16.msra.mxu0 0
        %1937 = vmatprep.subr.bf16.mxu0 0
        %1938 = vmatpush2.bf16.msra.mxu0 0
        %1939 = vmatprep.subr.bf16.mxu0 0
        %1940 = vmatpush2.bf16.msra.mxu0 0
        %1941 = vmatprep.subr.bf16.mxu0 0
        %1942 = vmatpush2.bf16.msra.mxu0 0
        %1943 = vmatprep.subr.bf16.mxu0 0
        %1944 = vmatpush2.bf16.msra.mxu0 0
        %1945 = vmatprep.mubr.bf16.mxu0 0
        %1946 = vmatmul.mubr.bf16.gmra.mxu0 %v1911
        %v1947 = vpop.f32.mrf.mxu0
        %v1948 = vadd.f32 %v1896, %v1947
        %v1949 = vpop.f32.mrf.mxu0
        %v1950 = vpop.f32.mrf.mxu0
        %v1951 = vadd.f32 %v1896, %v1950
        %v1952 = vpop.f32.mrf.mxu0
        %1953 = vdwg.mxu0
        %v1954 = vmax.f32 %v1948, 0.0
        %v1955 = vmax.f32 %v1951, 0.0
        %v1956 = vld [vmem:[%s728] sm:$0xf]
        %v1957 = vld [vmem:[%s728 + $0x4] sm:$0xf]
        %v1958 = vld [vmem:[%s728 + $0x8] sm:$0xf]
        %v1959 = vld [vmem:[%s728 + $0xc] sm:$0xf]
        %v1960 = vld [vmem:[%s728 + $0x10] sm:$0xf]
        %v1961 = vld [vmem:[%s728 + $0x14] sm:$0xf]
        %v1962 = vld [vmem:[%s728 + $0x18] sm:$0xf]
        %v1963 = vld [vmem:[%s728 + $0x1c] sm:$0xf]
        %v1964 = vld [vmem:[%s728 + $0x20] sm:$0xf]
        %v1965 = vld [vmem:[%s728 + $0x24] sm:$0xf]
        %v1966 = vld [vmem:[%s728 + $0x28] sm:$0xf]
        %v1967 = vld [vmem:[%s728 + $0x2c] sm:$0xf]
        %v1968 = vld [vmem:[%s728 + $0x30] sm:$0xf]
        %v1969 = vld [vmem:[%s728 + $0x34] sm:$0xf]
        %v1970 = vld [vmem:[%s728 + $0x38] sm:$0xf]
        %v1971 = vld [vmem:[%s728 + $0x3c] sm:$0xf]
        %v1972 = vpack.c.bf16 %v1955, %v1954
        %v1973 = vld [vmem:[%s731] sm:$0x1]
        %v1975 = vlaneseq
        %v1976 = vshrl.u32 %v1975, 7
        %v1977 = vsub.s32 0, %v1976
        %v1978 = vrot.slane %v1973, %v1977
        %v1996 = vunpack.c.l.b16 %v1956
        %v1997 = vunpack.c.l.b16 %v1957
        %v1998 = vunpack.c.l.b16 %v1958
        %v1999 = vunpack.c.l.b16 %v1959
        %v2000 = vunpack.c.l.b16 %v1960
        %v2001 = vunpack.c.l.b16 %v1961
        %v2002 = vunpack.c.l.b16 %v1962
        %v2003 = vunpack.c.l.b16 %v1963
        %v2004 = vunpack.c.l.b16 %v1964
        %v2005 = vunpack.c.l.b16 %v1965
        %v2006 = vunpack.c.l.b16 %v1966
        %v2007 = vunpack.c.l.b16 %v1967
        %v2008 = vunpack.c.l.b16 %v1968
        %v2009 = vunpack.c.l.b16 %v1969
        %v2010 = vunpack.c.l.b16 %v1970
        %v2011 = vunpack.c.l.b16 %v1971
        %v2012 = vpack.c.b16 %v1997, %v1996
        %v2013 = vpack.c.b16 %v1999, %v1998
        %v2014 = vpack.c.b16 %v2001, %v2000
        %v2015 = vpack.c.b16 %v2003, %v2002
        %v2016 = vpack.c.b16 %v2005, %v2004
        %v2017 = vpack.c.b16 %v2007, %v2006
        %v2018 = vpack.c.b16 %v2009, %v2008
        %v2019 = vpack.c.b16 %v2011, %v2010
        %2028 = vmatprep.subr.bf16.mxu0 0
        %2029 = vmatpush1.bf16.msra.mxu0 %v2019
        %2030 = vmatprep.subr.bf16.mxu0 0
        %2031 = vmatpush1.bf16.msra.mxu0 %v2018
        %2032 = vmatprep.subr.bf16.mxu0 0
        %2033 = vmatpush1.bf16.msra.mxu0 %v2017
        %2034 = vmatprep.subr.bf16.mxu0 0
        %2035 = vmatpush1.bf16.msra.mxu0 %v2016
        %2036 = vmatprep.subr.bf16.mxu0 0
        %2037 = vmatpush1.bf16.msra.mxu0 %v2015
        %2038 = vmatprep.subr.bf16.mxu0 0
        %2039 = vmatpush1.bf16.msra.mxu0 %v2014
        %2040 = vmatprep.subr.bf16.mxu0 0
        %2041 = vmatpush1.bf16.msra.mxu0 %v2013
        %2042 = vmatprep.subr.bf16.mxu0 0
        %2043 = vmatpush1.bf16.msra.mxu0 %v2012
        %2044 = vmatprep.subr.bf16.mxu0 0
        %2045 = vmatpush2.bf16.msra.mxu0 0
        %2046 = vmatprep.subr.bf16.mxu0 0
        %2047 = vmatpush2.bf16.msra.mxu0 0
        %2048 = vmatprep.subr.bf16.mxu0 0
        %2049 = vmatpush2.bf16.msra.mxu0 0
        %2050 = vmatprep.subr.bf16.mxu0 0
        %2051 = vmatpush2.bf16.msra.mxu0 0
        %2052 = vmatprep.subr.bf16.mxu0 0
        %2053 = vmatpush2.bf16.msra.mxu0 0
        %2054 = vmatprep.subr.bf16.mxu0 0
        %2055 = vmatpush2.bf16.msra.mxu0 0
        %2056 = vmatprep.subr.bf16.mxu0 0
        %2057 = vmatpush2.bf16.msra.mxu0 0
        %2058 = vmatprep.subr.bf16.mxu0 0
        %2059 = vmatpush2.bf16.msra.mxu0 0
        %2060 = vmatprep.mubr.bf16.mxu0 0
        %2061 = vmatmul.mubr.bf16.gmra.mxu0 %v1972
        %v2062 = vpop.f32.mrf.mxu0
        %v2063 = vadd.f32 %v1978, %v2062
        %v2064 = vpop.f32.mrf.mxu0
        %v2065 = vpop.f32.mrf.mxu0
        %v2066 = vadd.f32 %v1978, %v2065
        %v2067 = vpop.f32.mrf.mxu0
        %2068 = vdwg.mxu0
        %v2069 = vadd.f32 %v1840, %v2063
        %v2070 = vadd.f32 %v1841, %v2066
        %2071 = vst.msk [vmem:[#allocation2] sm:$0xff] %vm748, %v2069
        %2072 = vst.msk [vmem:[#allocation2 + $0x8] sm:$0xff] %vm748, %v2070
        %p2073 = scmp.eq.s32.totalorder %s34, 1
        // Predicated region
        $region93: #{tpu_custom_call.1} parent=87 // pred_check
          %p2074 = pneg %p2073
        $region94: #{tpu_custom_call.1} parent=87 // pred_check_branch
          %2076 = sbr.rel (%p2074) target = $region96
        $region95: #{tpu_custom_call.1} parent=87 // pred_region
          %v2077 = vld [vmem:[%s13] sm:$0x1]
          %v2078 = vld [vmem:[%s14] sm:$0x1]
          %v2079 = vsel %vm748, %v2069, 0.0
          %2080 = vadd.xlane.f32.xlu0 %v2079
          %v2081 = vpop.xlane.xlu0 %2080
          %v2082 = vsel %vm748, %v2070, 0.0
          %2083 = vadd.xlane.f32.xlu0 %v2082
          %v2084 = vpop.xlane.xlu0 %2083
          %v2085 = vmul.f32 %v2081, %v755
          %v2086 = vmul.f32 %v2084, %v755
          %v2087 = vsub.f32 %v2069, %v2085
          %v2088 = vsub.f32 %v2070, %v2086
          %v2089 = vmul.f32 %v2087, %v2087
          %v2090 = vmul.f32 %v2088, %v2088
          %v2091 = vsel %vm748, %v2089, 0.0
          %2092 = vadd.xlane.f32.xlu0 %v2091
          %v2093 = vpop.xlane.xlu0 %2092
          %v2094 = vsel %vm748, %v2090, 0.0
          %2095 = vadd.xlane.f32.xlu0 %v2094
          %v2096 = vpop.xlane.xlu0 %2095
          %v2097 = vmul.f32 %v2093, %v755
          %v2098 = vmul.f32 %v2096, %v755
          %v2099 = vadd.f32 %v2097, 1e-05
          %v2100 = vadd.f32 %v2098, 1e-05
          %v2101 = vrsqrt.pop %v2099
          %v2102 = vrsqrt.pop %v2100
          %v2103 = vmul.f32 %v2087, %v2101
          %v2104 = vmul.f32 %v2088, %v2102
          %v2106 = vlaneseq
          %v2107 = vshrl.u32 %v2106, 7
          %v2108 = vsub.s32 0, %v2107
          %v2109 = vrot.slane %v2077, %v2108
          %v2111 = vmul.f32 %v2103, %v2109
          %v2112 = vmul.f32 %v2104, %v2109
          %v2114 = vlaneseq
          %v2115 = vshrl.u32 %v2114, 7
          %v2116 = vsub.s32 0, %v2115
          %v2117 = vrot.slane %v2078, %v2116
          %v2119 = vadd.f32 %v2111, %v2117
          %v2120 = vadd.f32 %v2112, %v2117
          %v2121 = vld [vmem:[%s15] sm:$0xf]
          %v2122 = vld [vmem:[%s15 + $0x4] sm:$0xf]
          %v2123 = vld [vmem:[%s15 + $0x8] sm:$0xf]
          %v2124 = vld [vmem:[%s15 + $0xc] sm:$0xf]
          %v2125 = vpack.c.bf16 %v2120, %v2119
          %v2126 = vld [vmem:[%s16] sm:$0x1]
          %v2128 = vlaneseq
          %v2129 = vshrl.u32 %v2128, 7
          %v2130 = vsub.s32 0, %v2129
          %v2131 = vrot.slane %v2126, %v2130
          %v2137 = vunpack.c.l.b16 %v2121
          %v2138 = vunpack.c.l.b16 %v2122
          %v2139 = vunpack.c.l.b16 %v2123
          %v2140 = vunpack.c.l.b16 %v2124
          %v2141 = vpack.c.b16 %v2138, %v2137
          %v2142 = vpack.c.b16 %v2140, %v2139
          %v2146 = vsel %vm748, %v2125, 0
          %2148 = vmatprep.subr.bf16.mxu0 0
          %2149 = vmatpush1.bf16.msra.mxu0 0
          %2150 = vmatprep.subr.bf16.mxu0 0
          %2151 = vmatpush1.bf16.msra.mxu0 0
          %2152 = vmatprep.subr.bf16.mxu0 0
          %2153 = vmatpush1.bf16.msra.mxu0 0
          %2154 = vmatprep.subr.bf16.mxu0 0
          %2155 = vmatpush1.bf16.msra.mxu0 0
          %2156 = vmatprep.subr.bf16.mxu0 0
          %2157 = vmatpush1.bf16.msra.mxu0 0
          %2158 = vmatprep.subr.bf16.mxu0 0
          %2159 = vmatpush1.bf16.msra.mxu0 0
          %2160 = vmatprep.subr.bf16.mxu0 0
          %2161 = vmatpush1.bf16.msra.mxu0 %v2142
          %2162 = vmatprep.subr.bf16.mxu0 0
          %2163 = vmatpush1.bf16.msra.mxu0 %v2141
          %2164 = vmatprep.subr.bf16.mxu0 0
          %2165 = vmatpush2.bf16.msra.mxu0 0
          %2166 = vmatprep.subr.bf16.mxu0 0
          %2167 = vmatpush2.bf16.msra.mxu0 0
          %2168 = vmatprep.subr.bf16.mxu0 0
          %2169 = vmatpush2.bf16.msra.mxu0 0
          %2170 = vmatprep.subr.bf16.mxu0 0
          %2171 = vmatpush2.bf16.msra.mxu0 0
          %2172 = vmatprep.subr.bf16.mxu0 0
          %2173 = vmatpush2.bf16.msra.mxu0 0
          %2174 = vmatprep.subr.bf16.mxu0 0
          %2175 = vmatpush2.bf16.msra.mxu0 0
          %2176 = vmatprep.subr.bf16.mxu0 0
          %2177 = vmatpush2.bf16.msra.mxu0 0
          %2178 = vmatprep.subr.bf16.mxu0 0
          %2179 = vmatpush2.bf16.msra.mxu0 0
          %2180 = vmatprep.mubr.bf16.mxu0 0
          %2181 = vmatmul.mubr.bf16.gmra.mxu0 %v2146
          %v2182 = vpop.f32.mrf.mxu0
          %v2183 = vadd.f32 %v2131, %v2182
          %v2184 = vpop.f32.mrf.mxu0
          %v2185 = vpop.f32.mrf.mxu0
          %v2186 = vadd.f32 %v2131, %v2185
          %v2187 = vpop.f32.mrf.mxu0
          %2188 = vdwg.mxu0
          %2189 = vst [vmem:[#allocation4] sm:$0xff] %v2183
          %2190 = vst [vmem:[#allocation4 + $0x8] sm:$0xff] %v2186
        $region96: #{tpu_custom_call.1} parent=87 // pred_fallthru
          _
        // Predicated region
        $region97: #{tpu_custom_call.1} parent=87 // pred_check
          %p2191 = pneg %p476
        $region98: #{tpu_custom_call.1} parent=87 // pred_check_branch
          %2193 = sbr.rel (%p2191) target = $region100
        $region99: #{tpu_custom_call.1} parent=87 // pred_region
          %s2194 = smul.u32 2, %s33
          %s2196 = ssub.s32 256, 256
          %2197 = vsyncadd [#allocation5], %s2196
          %s2198 = smul.addr %s2194, 128
          %s2199 = scalar_lea.hbm %s17, %s2198
          %s2200 = sshll.u32 [#allocation4], 4
          %s2201 = int_to_ptr.vmem [resolvable:$true] %s2200
          %2206 = dma.vmem_to_hbm [thread:$0]  %s2201, 256, %s2199, [#allocation5], 128, 128, 8
        $region100: #{tpu_custom_call.1} parent=87 // pred_fallthru
          _
        // Predicated region
        $region101: #{tpu_custom_call.1} parent=87 // pred_check
          %p2207 = pneg %p476
        $region102: #{tpu_custom_call.1} parent=87 // pred_check_branch
          %2209 = sbr.rel (%p2207) target = $region104
        $region103: #{tpu_custom_call.1} parent=87 // pred_region
          %2210 = dma.done [#allocation5], 256
        $region104: #{tpu_custom_call.1} parent=87 // pred_fallthru
          _
      $region88: #{tpu_custom_call.1} parent=5 // pred_fallthru
        _
      %p2211 = scmp.le.s32.totalorder 2, %s24
      // Predicated region
      $region105: #{tpu_custom_call.1} parent=5 // pred_check
        %p2212 = pneg %p2211
      $region106: #{tpu_custom_call.1} parent=5 // pred_check_branch
        %2214 = sbr.rel (%p2212) target = $region108
      $region107: #{tpu_custom_call.1} parent=5 // pred_region
        %s2215 = ssub.s32 %s24, 2
      $region108: #{tpu_custom_call.1} parent=5 // pred_fallthru
        _
    $region6: #{tpu_custom_call.1} parent=1 // loop_footer
      %s28 = sadd.s32 1, %s24
    $region7: #{tpu_custom_call.1} parent=1 // loop_footer_branch
      %23 = sbr.rel target = $region3
    $region8: #{tpu_custom_call.1} parent=1 // loop_exit
      _
    %2216 = vsyncpa [#allocation5], 1
    %s2217 = scalar_lea.sflag [#allocation5], 1
    %2218 = vsyncpa %s2217, 1

</llo_original>
